<compile_context>
chip_gen: v5e
topology: v5e:2x2
jax: 0.10.0
libtpu: 0.0.40
codegen_flags: <defaults>
</compile_context>

<pallas_src>
import jax
import jax.numpy as jnp
from jax.experimental import pallas as pl
from jax.experimental.pallas import tpu as pltpu


def _mlp_kernel(x_ref, w1_ref, b1_ref, w2_ref, b2_ref, o_ref):
    # Cast x to bf16 in-kernel (VPU filler hidden under MXU/DMA) instead of
    # materializing a bf16 copy of x in HBM from the wrapper.
    xb = x_ref[...].astype(jnp.bfloat16)
    # hidden = relu(x @ W1 + b1): bf16 MXU matmul, f32 accumulation, f32 epilogue.
    h = jnp.dot(xb, w1_ref[...], preferred_element_type=jnp.float32)
    h = jnp.maximum(h + b1_ref[...], 0.0)
    # out = hidden @ W2 + b2: re-quantize hidden to bf16 for the second MXU pass.
    out = jnp.dot(h.astype(jnp.bfloat16), w2_ref[...],
                  preferred_element_type=jnp.float32)
    out = out + b2_ref[...]
    o_ref[...] = out.astype(o_ref.dtype)


def _vmem_capacity_bytes():
    try:
        return int(pltpu.get_tpu_info().vmem_capacity_bytes)
    except Exception:
        return 64 * 1024 * 1024  # conservative: v7x has 64 MiB per TensorCore


def _spec(block_shape, index_map, buffers=None):
    """BlockSpec with optional explicit buffer count (graceful fallback)."""
    if buffers is None:
        return pl.BlockSpec(block_shape, index_map)
    try:
        return pl.BlockSpec(block_shape, index_map,
                            pipeline_mode=pl.Buffered(buffers))
    except TypeError:  # older BlockSpec signature without pipeline_mode
        return pl.BlockSpec(block_shape, index_map)


def eeg_projector(x, w1, b1, w2, b2, *, tb=None, out_dtype=None):
    """x: (B, D_in); w1: (D_in, H); b1: (H,); w2: (H, D_out); b2: (D_out,)."""
    B, D_in = x.shape
    H = w1.shape[1]
    D_out = w2.shape[1]
    out_dtype = x.dtype if out_dtype is None else out_dtype
    x_isz = jnp.dtype(x.dtype).itemsize
    out_isz = jnp.dtype(out_dtype).itemsize

    # Weights should already be bf16 (converted once at parameter init time);
    # these casts are then no-ops.
    w1b = w1.astype(jnp.bfloat16)
    w2b = w2.astype(jnp.bfloat16)
    b1f = jnp.asarray(b1, jnp.float32).reshape(1, H)
    b2f = jnp.asarray(b2, jnp.float32).reshape(1, D_out)

    vmem_cap = _vmem_capacity_bytes()
    # Resident operands are single-buffered (constant index_map + Buffered(1)).
    resident = (D_in * H + H * D_out) * 2 + (H + D_out) * 4

    def footprint(t):
        return (resident
                + 2 * t * D_in * x_isz           # x tiles (double-buffered)
                + 2 * t * D_out * out_isz        # out tiles (double-buffered)
                + t * H * 4 + t * D_out * 4)     # f32 hidden / out temporaries

    if tb is None:
        tb = 128
        for cand in (1024, 512, 256, 128):
            if footprint(cand) > int(0.85 * vmem_cap):
                continue
            # Keep >= 2 grid steps when the batch allows it, so the "parallel"
            # batch axis can shard across both v7x TensorCores.
            if B > 128 and pl.cdiv(B, cand) < 2:
                continue
            tb = cand
            break

    grid = (pl.cdiv(B, tb),)  # partial trailing block: Pallas masks OOB stores

    flops = 2 * B * (D_in * H + H * D_out)
    bytes_accessed = (B * D_in * x_isz
                      + (D_in * H + H * D_out) * 2
                      + (H + D_out) * 4
                      + B * D_out * out_isz)
    cost = pl.CostEstimate(flops=flops, transcendentals=0,
                           bytes_accessed=bytes_accessed)

    vmem_needed = footprint(tb)
    # TODO(synk): if resident bf16 weights ever exceed ~60% of physical VMEM,
    # tile the K/H reduction axis (f32 accumulator scratch + "arbitrary" axis)
    # instead of keeping W1/W2 fully resident.
    vmem_limit = int(min(max(vmem_needed * 3 // 2, 32 * 1024 * 1024),
                         0.9 * vmem_cap))

    # NOTE: if a trace ever shows exposed x DMA (compute/tile is short since
    # K = D_in is small), raise the x spec to pl.Buffered(3).
    out = pl.pallas_call(
        _mlp_kernel,
        out_shape=jax.ShapeDtypeStruct((B, D_out), out_dtype),
        grid=grid,
        in_specs=[
            _spec((tb, D_in), lambda i: (i, 0)),            # x tile (native dtype)
            _spec((D_in, H), lambda i: (0, 0), buffers=1),  # W1 resident (bf16)
            _spec((1, H), lambda i: (0, 0), buffers=1),     # b1 (f32)
            _spec((H, D_out), lambda i: (0, 0), buffers=1), # W2 resident (bf16)
            _spec((1, D_out), lambda i: (0, 0), buffers=1), # b2 (f32)
        ],
        out_specs=pl.BlockSpec((tb, D_out), lambda i: (i, 0)),
        cost_estimate=cost,
        compiler_params=pltpu.CompilerParams(
            dimension_semantics=("parallel",),
            vmem_limit_bytes=vmem_limit),
    )(x, w1b, b1f, w2b, b2f)

    return out


if __name__ == "__main__":
    # Small shapes consistent with Linear(D_in, H) -> ReLU -> Linear(H, D_out);
    # feature dims are multiples of 128 (lane-dense). Batch is deliberately NOT
    # a multiple of the tile so the cdiv / partial-trailing-block path runs.
    B, D_in, H, D_out = 300, 128, 512, 256

    key = jax.random.PRNGKey(0)
    kx, k1, kb1, k2, kb2 = jax.random.split(key, 5)

    x = jax.random.normal(kx, (B, D_in), dtype=jnp.float32)

    # nn.Linear-style init; weights pre-converted to bf16 ONCE (param init),
    # not per call. Biases stay f32.
    w1 = (jax.random.uniform(k1, (D_in, H), jnp.float32, -1.0, 1.0)
          / jnp.sqrt(D_in)).astype(jnp.bfloat16)
    b1 = jax.random.uniform(kb1, (H,), jnp.float32, -1.0, 1.0) / jnp.sqrt(D_in)
    w2 = (jax.random.uniform(k2, (H, D_out), jnp.float32, -1.0, 1.0)
          / jnp.sqrt(H)).astype(jnp.bfloat16)
    b2 = jax.random.uniform(kb2, (D_out,), jnp.float32, -1.0, 1.0) / jnp.sqrt(H)

    out = jax.block_until_ready(eeg_projector(x, w1, b1, w2, b2))
    assert out.shape == (B, D_out)
    assert out.dtype == x.dtype

    # Reference with matching bf16 rounding (f32 accumulation) -- same math as
    # the PyTorch module modulo the bf16 data path.
    h_ref = jnp.dot(x.astype(jnp.bfloat16), w1,
                    preferred_element_type=jnp.float32) + b1[None, :]
    h_ref = jnp.maximum(h_ref, 0.0).astype(jnp.bfloat16)
    ref = jnp.dot(h_ref, w2, preferred_element_type=jnp.float32) + b2[None, :]
    assert jnp.allclose(out, ref, atol=2e-2, rtol=2e-2)

    # Loose sanity check against the pure-f32 forward (bf16 rounding only).
    ref_f32 = (jnp.maximum(x @ w1.astype(jnp.float32) + b1[None, :], 0.0)
               @ w2.astype(jnp.float32) + b2[None, :])
    assert jnp.allclose(out, ref_f32, atol=1e-1, rtol=1e-1)

    print("KERNEL_OK")
</pallas_src>

<mosaic_0001>
module attributes {stable_mosaic.version = 11 : i64} {
  func.func @_mlp_kernel(%arg0: i32, %arg1: memref<256x128xf32, #tpu.memory_space<vmem>>, %arg2: memref<128x512xbf16, #tpu.memory_space<vmem>>, %arg3: memref<1x512xf32, #tpu.memory_space<vmem>>, %arg4: memref<512x256xbf16, #tpu.memory_space<vmem>>, %arg5: memref<1x256xf32, #tpu.memory_space<vmem>>, %arg6: memref<256x256xf32, #tpu.memory_space<vmem>>) attributes {dimension_semantics = [#tpu.dimension_semantics<parallel>], iteration_bounds = array<i64: 2>, scalar_prefetch = 0 : i64, scratch_operands = 0 : i64, tpu.core_type = #tpu.core_type<tc>, window_params = [{transform_indices = @transform_0, window_bounds = array<i64: 256, 128>}, {pipeline_mode = #tpu.pipeline_mode<synchronous>, transform_indices = @transform_1, window_bounds = array<i64: 128, 512>}, {pipeline_mode = #tpu.pipeline_mode<synchronous>, transform_indices = @transform_2, window_bounds = array<i64: 1, 512>}, {pipeline_mode = #tpu.pipeline_mode<synchronous>, transform_indices = @transform_3, window_bounds = array<i64: 512, 256>}, {pipeline_mode = #tpu.pipeline_mode<synchronous>, transform_indices = @transform_4, window_bounds = array<i64: 1, 256>}, {transform_indices = @transform_5, window_bounds = array<i64: 256, 256>}]} {
    %c0 = arith.constant 0 : index
    %c0_0 = arith.constant 0 : index
    %0 = vector.load %arg1[%c0, %c0_0] : memref<256x128xf32, #tpu.memory_space<vmem>>, vector<256x128xf32>
    %1 = arith.truncf %0 : vector<256x128xf32> to vector<256x128xbf16>
    %c0_1 = arith.constant 0 : index
    %c0_2 = arith.constant 0 : index
    %2 = vector.load %arg2[%c0_1, %c0_2] : memref<128x512xbf16, #tpu.memory_space<vmem>>, vector<128x512xbf16>
    %cst = arith.constant dense<0.000000e+00> : vector<256x512xf32>
    %3 = tpu.matmul %1, %2, %cst {dimension_numbers = #tpu.dot_dimension_numbers<[1], [0], [0], [1], [0, 0, 1, 1], [], []>} : vector<256x128xbf16>, vector<128x512xbf16>, vector<256x512xf32> -> vector<256x512xf32>
    %c0_3 = arith.constant 0 : index
    %c0_4 = arith.constant 0 : index
    %4 = vector.load %arg3[%c0_3, %c0_4] : memref<1x512xf32, #tpu.memory_space<vmem>>, vector<1x512xf32>
    %5 = vector.broadcast %4 : vector<1x512xf32> to vector<256x512xf32>
    %6 = arith.addf %3, %5 : vector<256x512xf32>
    %cst_5 = arith.constant 0.000000e+00 : f32
    %7 = vector.broadcast %cst_5 : f32 to vector<256x512xf32>
    %8 = arith.maximumf %6, %7 : vector<256x512xf32>
    %9 = arith.truncf %8 : vector<256x512xf32> to vector<256x512xbf16>
    %c0_6 = arith.constant 0 : index
    %c0_7 = arith.constant 0 : index
    %10 = vector.load %arg4[%c0_6, %c0_7] : memref<512x256xbf16, #tpu.memory_space<vmem>>, vector<512x256xbf16>
    %cst_8 = arith.constant dense<0.000000e+00> : vector<256x256xf32>
    %11 = tpu.matmul %9, %10, %cst_8 {dimension_numbers = #tpu.dot_dimension_numbers<[1], [0], [0], [1], [0, 0, 1, 1], [], []>} : vector<256x512xbf16>, vector<512x256xbf16>, vector<256x256xf32> -> vector<256x256xf32>
    %c0_9 = arith.constant 0 : index
    %c0_10 = arith.constant 0 : index
    %12 = vector.load %arg5[%c0_9, %c0_10] : memref<1x256xf32, #tpu.memory_space<vmem>>, vector<1x256xf32>
    %13 = vector.broadcast %12 : vector<1x256xf32> to vector<256x256xf32>
    %14 = arith.addf %11, %13 : vector<256x256xf32>
    %c0_11 = arith.constant 0 : index
    %c0_12 = arith.constant 0 : index
    %15 = vector.load %arg6[%c0_11, %c0_12] : memref<256x256xf32, #tpu.memory_space<vmem>>, vector<256x256xf32>
    tpu.vector_store %arg6[%c0_11, %c0_12], %14 {strides = array<i32>} : memref<256x256xf32, #tpu.memory_space<vmem>>, vector<256x256xf32>,
    return
  }
  func.func @transform_0(%arg0: i32) -> (i32, i32) {
    %c0_i32 = arith.constant 0 : i32
    %c0_i32_0 = arith.constant 0 : i32
    return %arg0, %c0_i32 : i32, i32
  }
  func.func @transform_1(%arg0: i32) -> (i32, i32) {
    %c0_i32 = arith.constant 0 : i32
    %c0_i32_0 = arith.constant 0 : i32
    %c0_i32_1 = arith.constant 0 : i32
    return %c0_i32, %c0_i32_0 : i32, i32
  }
  func.func @transform_2(%arg0: i32) -> (i32, i32) {
    %c0_i32 = arith.constant 0 : i32
    %c0_i32_0 = arith.constant 0 : i32
    %c0_i32_1 = arith.constant 0 : i32
    return %c0_i32, %c0_i32_0 : i32, i32
  }
  func.func @transform_3(%arg0: i32) -> (i32, i32) {
    %c0_i32 = arith.constant 0 : i32
    %c0_i32_0 = arith.constant 0 : i32
    %c0_i32_1 = arith.constant 0 : i32
    return %c0_i32, %c0_i32_0 : i32, i32
  }
  func.func @transform_4(%arg0: i32) -> (i32, i32) {
    %c0_i32 = arith.constant 0 : i32
    %c0_i32_0 = arith.constant 0 : i32
    %c0_i32_1 = arith.constant 0 : i32
    return %c0_i32, %c0_i32_0 : i32, i32
  }
  func.func @transform_5(%arg0: i32) -> (i32, i32) {
    %c0_i32 = arith.constant 0 : i32
    %c0_i32_0 = arith.constant 0 : i32
    return %arg0, %c0_i32 : i32, i32
  }
}

</mosaic_0001>

<llo_original>
// kernel: tpu_custom_call.1
$region0: #{tpu_custom_call.1}
  #allocation0 [shape = 'u32[]', space=smem, size = 0x4, offset = 0x4, fixed_abs, tag = 'smem constant byte address 0x4 - core index']
  #allocation1 [shape = 'u32[72,128]{1,0:T(1,128)}', space=vmem, size = 0x9000, scoped, tag = 'internal scratch']
  %s0 = inlined_call_operand.hbm [shape: f32[300,128], index: 0, kind: input, shape index: {}]
  %s1 = inlined_call_operand.hbm [shape: bf16[128,512], index: 1, kind: input, shape index: {}]
  %s2 = inlined_call_operand.hbm [shape: f32[1,512], index: 2, kind: input, shape index: {}]
  %s3 = inlined_call_operand.hbm [shape: bf16[512,256], index: 3, kind: input, shape index: {}]
  %s4 = inlined_call_operand.vmem [shape: f32[1,256], index: 4, kind: input, shape index: {}]
  %s5 = inlined_call_operand.hbm [shape: f32[300,256], index: 5, kind: output, shape index: {}]
  %s6 = sld [smem:[#allocation0]]
  $region69: #{tpu_custom_call.1} parent=0
    _
  %s8 = ssub.s32 1, %s6
  %s9 = scalar_select 0, %s8, %s6
  $region1: #{tpu_custom_call.1} parent=0
    #allocation2 [shape = 'u8[262144]{0}', space=vmem, size = 0x40000, scoped, tag = 'input window, operand 0']
    #allocation3 [shape = 's32[2]{0}', space=sflag, size = 0x8, scoped, tag = 'scoped memory for tpu_custom_call.1']
    #allocation4 [shape = 's32[2]{0}', space=sflag, size = 0x8, scoped, tag = 'scoped memory for tpu_custom_call.1']
    #allocation5 [shape = 'u8[131072]{0}', space=vmem, size = 0x20000, scoped, tag = 'input window, operand 1, single buffered']
    #allocation6 [shape = 's32[1]{0}', space=sflag, size = 0x4, scoped, tag = 'scoped memory for tpu_custom_call.1']
    #allocation7 [shape = 'u8[2048]{0}', space=vmem, size = 0x800, scoped, tag = 'input window, operand 2, single buffered']
    #allocation8 [shape = 'u8[262144]{0}', space=vmem, size = 0x40000, scoped, tag = 'input window, operand 3, single buffered']
    #allocation9 [shape = 's32[1]{0}', space=sflag, size = 0x4, scoped, tag = 'scoped memory for tpu_custom_call.1']
    #allocation10 [shape = 'u8[524288]{0}', space=vmem, size = 0x80000, scoped, tag = 'output window, operand 0']
    %10 = vsyncpa [#allocation3], 0
    %s11 = scalar_lea.sflag [#allocation3], 1
    %12 = vsyncpa %s11, 0
    %13 = vsyncpa [#allocation6], 0
    %14 = vsyncpa [#allocation9], 0
    %15 = vsyncpa [#allocation4], 0
    %s16 = scalar_lea.sflag [#allocation4], 1
    %17 = vsyncpa %s16, 0
    loop: start=0, step=1, limit=4
    $region2: #{tpu_custom_call.1} parent=1 // loop_pre_header
      _
    $region3: #{tpu_custom_call.1} parent=1 // loop_header
      %s19 = sphi 0, %s23
      %p20 = scmp.ge.s32.totalorder %s19, 4
      %s29 = sphi 0, %s31
      %s32 = sphi 0, %s29
      %s33 = sphi 0, %s32
      %s49 = sphi 0, %s33
      %s53 = sphi 0, %s53
      %s55 = sphi 0, %s53
      %s56 = sphi 0, %s55
      %s70 = sphi 0, %s56
      %s74 = sphi 0, %s74
      %s76 = sphi 0, %s74
      %s77 = sphi 0, %s76
      %s91 = sphi 0, %s77
      %s95 = sphi 0, %s95
      %s97 = sphi 0, %s95
      %s98 = sphi 0, %s97
      %s112 = sphi 0, %s98
      %s116 = sphi 0, %s116
      %s118 = sphi 0, %s116
      %s119 = sphi 0, %s118
      %s133 = sphi 0, %s119
      %s139 = sphi 0, %s141
      %s142 = sphi 0, %s139
      %s143 = sphi 0, %s142
      %s159 = sphi 0, %s143
    $region4: #{tpu_custom_call.1} parent=1 // loop_header_branch
      %22 = sbr.rel (%p20) target = $region8
    $region5: #{tpu_custom_call.1} parent=1 // loop_body
      %s24 = ssub.s32 %s19, 1
      %s25 = ssub.s32 %s19, 2
      %s26 = sadd.s32 %s19, 1
      %s27 = ssub.s32 %s19, %s26
      %p28 = scmp.eq.s32.totalorder %s27, 0
      %s30 = sadd.s32 %s29, 1
      %s31 = scalar_select %p28, %s29, %s30
      %p34 = pneg %p28
      %p35 = scmp.eq.s32.totalorder %s19, 1
      %p36 = por %p34, %p35
      %p37 = scmp.ne.s32.totalorder %s29, %s32
      %p38 = scmp.eq.s32.totalorder %s19, 0
      %p39 = por %p37, %p38
      %p40 = scmp.ne.s32.totalorder %s29, %s32
      %p41 = scmp.eq.s32.totalorder %s24, 1
      %p42 = por %p40, %p41
      %p43 = scmp.ne.s32.totalorder %s32, %s33
      %p44 = scmp.eq.s32.totalorder %s24, 0
      %p45 = por %p43, %p44
      %p46 = scmp.ne.s32.totalorder %s32, %s33
      %p47 = scmp.eq.s32.totalorder %s25, 1
      %p48 = por %p46, %p47
      %p50 = scmp.ne.s32.totalorder %s33, %s49
      %p51 = scmp.eq.s32.totalorder %s25, 0
      %p52 = por %p50, %p51
      %s54 = sadd.s32 %s53, 1
      %p57 = scmp.eq.s32.totalorder %s19, 1
      %p58 = scmp.ne.s32.totalorder %s53, %s55
      %p59 = scmp.eq.s32.totalorder %s19, 0
      %p60 = por %p58, %p59
      %p61 = scmp.ne.s32.totalorder %s53, %s55
      %p62 = scmp.eq.s32.totalorder %s24, 1
      %p63 = por %p61, %p62
      %p64 = scmp.ne.s32.totalorder %s55, %s56
      %p65 = scmp.eq.s32.totalorder %s24, 0
      %p66 = por %p64, %p65
      %p67 = scmp.ne.s32.totalorder %s55, %s56
      %p68 = scmp.eq.s32.totalorder %s25, 1
      %p69 = por %p67, %p68
      %p71 = scmp.ne.s32.totalorder %s56, %s70
      %p72 = scmp.eq.s32.totalorder %s25, 0
      %p73 = por %p71, %p72
      %s75 = sadd.s32 %s74, 1
      %p78 = scmp.eq.s32.totalorder %s19, 1
      %p79 = scmp.ne.s32.totalorder %s74, %s76
      %p80 = scmp.eq.s32.totalorder %s19, 0
      %p81 = por %p79, %p80
      %p82 = scmp.ne.s32.totalorder %s74, %s76
      %p83 = scmp.eq.s32.totalorder %s24, 1
      %p84 = por %p82, %p83
      %p85 = scmp.ne.s32.totalorder %s76, %s77
      %p86 = scmp.eq.s32.totalorder %s24, 0
      %p87 = por %p85, %p86
      %p88 = scmp.ne.s32.totalorder %s76, %s77
      %p89 = scmp.eq.s32.totalorder %s25, 1
      %p90 = por %p88, %p89
      %p92 = scmp.ne.s32.totalorder %s77, %s91
      %p93 = scmp.eq.s32.totalorder %s25, 0
      %p94 = por %p92, %p93
      %s96 = sadd.s32 %s95, 1
      %p99 = scmp.eq.s32.totalorder %s19, 1
      %p100 = scmp.ne.s32.totalorder %s95, %s97
      %p101 = scmp.eq.s32.totalorder %s19, 0
      %p102 = por %p100, %p101
      %p103 = scmp.ne.s32.totalorder %s95, %s97
      %p104 = scmp.eq.s32.totalorder %s24, 1
      %p105 = por %p103, %p104
      %p106 = scmp.ne.s32.totalorder %s97, %s98
      %p107 = scmp.eq.s32.totalorder %s24, 0
      %p108 = por %p106, %p107
      %p109 = scmp.ne.s32.totalorder %s97, %s98
      %p110 = scmp.eq.s32.totalorder %s25, 1
      %p111 = por %p109, %p110
      %p113 = scmp.ne.s32.totalorder %s98, %s112
      %p114 = scmp.eq.s32.totalorder %s25, 0
      %p115 = por %p113, %p114
      %s117 = sadd.s32 %s116, 1
      %p120 = scmp.eq.s32.totalorder %s19, 1
      %p121 = scmp.ne.s32.totalorder %s116, %s118
      %p122 = scmp.eq.s32.totalorder %s19, 0
      %p123 = por %p121, %p122
      %p124 = scmp.ne.s32.totalorder %s116, %s118
      %p125 = scmp.eq.s32.totalorder %s24, 1
      %p126 = por %p124, %p125
      %p127 = scmp.ne.s32.totalorder %s118, %s119
      %p128 = scmp.eq.s32.totalorder %s24, 0
      %p129 = por %p127, %p128
      %p130 = scmp.ne.s32.totalorder %s118, %s119
      %p131 = scmp.eq.s32.totalorder %s25, 1
      %p132 = por %p130, %p131
      %p134 = scmp.ne.s32.totalorder %s119, %s133
      %p135 = scmp.eq.s32.totalorder %s25, 0
      %p136 = por %p134, %p135
      %s137 = ssub.s32 %s19, %s26
      %p138 = scmp.eq.s32.totalorder %s137, 0
      %s140 = sadd.s32 %s139, 1
      %s141 = scalar_select %p138, %s139, %s140
      %p144 = pneg %p138
      %p145 = scmp.eq.s32.totalorder %s19, 1
      %p146 = por %p144, %p145
      %p147 = scmp.ne.s32.totalorder %s139, %s142
      %p148 = scmp.eq.s32.totalorder %s19, 0
      %p149 = por %p147, %p148
      %p150 = scmp.ne.s32.totalorder %s139, %s142
      %p151 = scmp.eq.s32.totalorder %s24, 1
      %p152 = por %p150, %p151
      %p153 = scmp.ne.s32.totalorder %s142, %s143
      %p154 = scmp.eq.s32.totalorder %s24, 0
      %p155 = por %p153, %p154
      %p156 = scmp.ne.s32.totalorder %s142, %s143
      %p157 = scmp.eq.s32.totalorder %s25, 1
      %p158 = por %p156, %p157
      %p160 = scmp.ne.s32.totalorder %s143, %s159
      %p161 = scmp.eq.s32.totalorder %s25, 0
      %p162 = por %p160, %p161
      %p163 = scmp.le.s32.totalorder 1, %s19
      %p164 = scmp.lt.s32.totalorder %s19, 3
      %p165 = pnand %p163, %p164
      %p166 = pneg %p165
      // Predicated region
      $region9: #{tpu_custom_call.1} parent=5 // pred_check
        _
      $region10: #{tpu_custom_call.1} parent=5 // pred_check_branch
        %168 = sbr.rel (%p165) target = $region12
      $region11: #{tpu_custom_call.1} parent=5 // pred_region
        %s169 = ssub.s32 %s19, 1
        // Predicated region
        $region13: #{tpu_custom_call.1} parent=11 // pred_check
          %p170 = pneg %p66
        $region14: #{tpu_custom_call.1} parent=11 // pred_check_branch
          %172 = sbr.rel (%p170) target = $region16
        $region15: #{tpu_custom_call.1} parent=11 // pred_region
          %174 = vsyncadd [#allocation6], 0
          %s175 = sshll.u32 %s1, 4
          %s176 = int_to_ptr.hbm [resolvable:$true] %s175
          %s177 = sshll.u32 [#allocation5], 4
          %s178 = int_to_ptr.vmem [resolvable:$true] %s177
          %183 = dma.hbm_to_vmem [thread:$0]  %s176, 4096, %s178, [#allocation6], 256, 256, 16
        $region16: #{tpu_custom_call.1} parent=11 // pred_fallthru
          _
        // Predicated region
        $region17: #{tpu_custom_call.1} parent=11 // pred_check
          %p184 = pneg %p87
        $region18: #{tpu_custom_call.1} parent=11 // pred_check_branch
          %186 = sbr.rel (%p184) target = $region20
        $region19: #{tpu_custom_call.1} parent=11 // pred_region
          %188 = vsyncadd [#allocation6], 0
          %s190 = sshll.u32 %s2, 4
          %s191 = int_to_ptr.hbm [resolvable:$true] %s190
          %s192 = sshll.u32 [#allocation7], 4
          %s193 = int_to_ptr.vmem [resolvable:$true] %s192
          %195 = dma.hbm_to_vmem [thread:$0]  %s191, 64, %s193, [#allocation6]
        $region20: #{tpu_custom_call.1} parent=11 // pred_fallthru
          _
        // Predicated region
        $region21: #{tpu_custom_call.1} parent=11 // pred_check
          %p196 = pneg %p108
        $region22: #{tpu_custom_call.1} parent=11 // pred_check_branch
          %198 = sbr.rel (%p196) target = $region24
        $region23: #{tpu_custom_call.1} parent=11 // pred_region
          %200 = vsyncadd [#allocation9], 0
          %s201 = sshll.u32 %s3, 4
          %s202 = int_to_ptr.hbm [resolvable:$true] %s201
          %s203 = sshll.u32 [#allocation8], 4
          %s204 = int_to_ptr.vmem [resolvable:$true] %s203
          %209 = dma.hbm_to_vmem [thread:$0]  %s202, 8192, %s204, [#allocation9], 128, 128, 8
        $region24: #{tpu_custom_call.1} parent=11 // pred_fallthru
          _
        // Predicated region
        $region25: #{tpu_custom_call.1} parent=11 // pred_check
          %p210 = pneg %p129
        $region26: #{tpu_custom_call.1} parent=11 // pred_check_branch
          %212 = sbr.rel (%p210) target = $region28
        $region27: #{tpu_custom_call.1} parent=11 // pred_region
          _
        $region28: #{tpu_custom_call.1} parent=11 // pred_fallthru
          _
      $region12: #{tpu_custom_call.1} parent=5 // pred_fallthru
        _
      %p213 = scmp.lt.s32.totalorder %s19, 2
      // Predicated region
      $region29: #{tpu_custom_call.1} parent=5 // pred_check
        %p214 = pneg %p213
      $region30: #{tpu_custom_call.1} parent=5 // pred_check_branch
        %216 = sbr.rel (%p214) target = $region32
      $region31: #{tpu_custom_call.1} parent=5 // pred_region
        // Predicated region
        $region33: #{tpu_custom_call.1} parent=31 // pred_check
          %p217 = pneg %p39
        $region34: #{tpu_custom_call.1} parent=31 // pred_check_branch
          %219 = sbr.rel (%p217) target = $region36
        $region35: #{tpu_custom_call.1} parent=31 // pred_region
          %s220 = sand.u32 %s29, 1
          %s221 = scalar_lea.sflag [#allocation3], %s220
          %s222 = sand.u32 %s29, 1
          %s223 = smul.addr %s222, 256
          %s224 = scalar_lea.vmem [#allocation2], %s223
          %s225 = smul.u32 32, %s19
          %s226 = ssub.s32 38, %s225
          %p227 = scmp.lt.s32.totalorder %s226, 32
          %s228 = scalar_select %p227, %s226, 32
          %s229 = smul.u32 8, %s228
          %s230 = ssub.s32 256, %s229
          %s231 = sshll.u32 %s230, 4
          %232 = vsyncadd %s221, %s231
          %p233 = scmp.ne.s32.totalorder 0, %s229
          %s234 = smul.addr %s225, 8
          %s235 = scalar_lea.hbm %s0, %s234
          %s236 = smul.u32 8, %s228
          %s237 = sshll.u32 %s235, 4
          %s238 = int_to_ptr.hbm [resolvable:$true] %s237
          %s239 = sshll.u32 %s224, 4
          %s240 = int_to_ptr.vmem [resolvable:$true] %s239
          %s241 = sshll.u32 %s236, 4
          %245 = dma.hbm_to_vmem [thread:$0]  (%p233), %s238, %s241, %s240, %s221, 128, 128, 8
        $region36: #{tpu_custom_call.1} parent=31 // pred_fallthru
          _
      $region32: #{tpu_custom_call.1} parent=5 // pred_fallthru
        _
      %p246 = scmp.le.s32.totalorder 1, %s19
      %p247 = scmp.lt.s32.totalorder %s19, 3
      %p248 = pnand %p246, %p247
      %p249 = pneg %p248
      // Predicated region
      $region37: #{tpu_custom_call.1} parent=5 // pred_check
        _
      $region38: #{tpu_custom_call.1} parent=5 // pred_check_branch
        %251 = sbr.rel (%p248) target = $region40
      $region39: #{tpu_custom_call.1} parent=5 // pred_region
        %s252 = ssub.s32 %s19, 1
        %s253 = sand.u32 %s32, 1
        %s254 = scalar_lea.sflag [#allocation3], %s253
        %s255 = sand.u32 %s32, 1
        %s256 = smul.addr %s255, 256
        %s257 = scalar_lea.vmem [#allocation2], %s256
        // Predicated region
        $region41: #{tpu_custom_call.1} parent=39 // pred_check
          %p258 = pneg %p45
        $region42: #{tpu_custom_call.1} parent=39 // pred_check_branch
          %260 = sbr.rel (%p258) target = $region44
        $region43: #{tpu_custom_call.1} parent=39 // pred_region
          %262 = dma.done %s254, 4096
        $region44: #{tpu_custom_call.1} parent=39 // pred_fallthru
          _
        // Predicated region
        $region45: #{tpu_custom_call.1} parent=39 // pred_check
          %p263 = pneg %p66
        $region46: #{tpu_custom_call.1} parent=39 // pred_check_branch
          %265 = sbr.rel (%p263) target = $region48
        $region47: #{tpu_custom_call.1} parent=39 // pred_region
          %267 = dma.done [#allocation6], 4096
        $region48: #{tpu_custom_call.1} parent=39 // pred_fallthru
          _
        // Predicated region
        $region49: #{tpu_custom_call.1} parent=39 // pred_check
          %p268 = pneg %p87
        $region50: #{tpu_custom_call.1} parent=39 // pred_check_branch
          %270 = sbr.rel (%p268) target = $region52
        $region51: #{tpu_custom_call.1} parent=39 // pred_region
          %272 = dma.done [#allocation6], 64
        $region52: #{tpu_custom_call.1} parent=39 // pred_fallthru
          _
        // Predicated region
        $region53: #{tpu_custom_call.1} parent=39 // pred_check
          %p273 = pneg %p108
        $region54: #{tpu_custom_call.1} parent=39 // pred_check_branch
          %275 = sbr.rel (%p273) target = $region56
        $region55: #{tpu_custom_call.1} parent=39 // pred_region
          %277 = dma.done [#allocation9], 8192
        $region56: #{tpu_custom_call.1} parent=39 // pred_fallthru
          _
        %s278 = sand.u32 %s32, 1
        %s279 = scalar_lea.sflag [#allocation3], %s278
        %s280 = sand.u32 %s32, 1
        %s281 = smul.addr %s280, 256
        %s282 = scalar_lea.vmem [#allocation2], %s281
        %p283 = pneg %p45
        %p284 = pneg %p42
        %p285 = pneg %p66
        %p286 = pneg %p63
        %p287 = pneg %p87
        %p288 = pneg %p84
        %p289 = pneg %p108
        %p290 = pneg %p105
        %p291 = pneg %p129
        %p292 = pneg %p126
        %p293 = pneg %p155
        %p294 = pneg %p152
        %s295 = sand.u32 %s142, 1
        %s296 = scalar_lea.sflag [#allocation4], %s295
        %s297 = sand.u32 %s142, 1
        %s298 = smul.addr %s297, 512
        %s299 = scalar_lea.vmem [#allocation10], %s298
        %s300 = smul.u32 32, %s24
        %s301 = ssub.s32 38, %s300
        %p302 = scmp.lt.s32.totalorder %s301, 32
        %s303 = scalar_select %p302, %s301, 32
        %s304 = smul.u32 8, %s303
        %s305 = smul.u32 32, %s24
        %s306 = ssub.s32 38, %s305
        %p307 = scmp.lt.s32.totalorder %s306, 32
        %s308 = scalar_select %p307, %s306, 32
        %s309 = smul.u32 8, %s308
        %s310 = smul.u32 %s309, 2
        %v311 = vld [vmem:[%s257] sm:$0xff]
        %v312 = vld [vmem:[%s257 + $0x8] sm:$0xff]
        %v313 = vld [vmem:[%s257 + $0x10] sm:$0xff]
        %v314 = vld [vmem:[%s257 + $0x18] sm:$0xff]
        %v315 = vld [vmem:[%s257 + $0x20] sm:$0xff]
        %v316 = vld [vmem:[%s257 + $0x28] sm:$0xff]
        %v317 = vld [vmem:[%s257 + $0x30] sm:$0xff]
        %v318 = vld [vmem:[%s257 + $0x38] sm:$0xff]
        %v319 = vld [vmem:[%s257 + $0x40] sm:$0xff]
        %v320 = vld [vmem:[%s257 + $0x48] sm:$0xff]
        %v321 = vld [vmem:[%s257 + $0x50] sm:$0xff]
        %v322 = vld [vmem:[%s257 + $0x58] sm:$0xff]
        %v323 = vld [vmem:[%s257 + $0x60] sm:$0xff]
        %v324 = vld [vmem:[%s257 + $0x68] sm:$0xff]
        %v325 = vld [vmem:[%s257 + $0x70] sm:$0xff]
        %v326 = vld [vmem:[%s257 + $0x78] sm:$0xff]
        %v327 = vld [vmem:[%s257 + $0x80] sm:$0xff]
        %v328 = vld [vmem:[%s257 + $0x88] sm:$0xff]
        %v329 = vld [vmem:[%s257 + $0x90] sm:$0xff]
        %v330 = vld [vmem:[%s257 + $0x98] sm:$0xff]
        %v331 = vld [vmem:[%s257 + $0xa0] sm:$0xff]
        %v332 = vld [vmem:[%s257 + $0xa8] sm:$0xff]
        %v333 = vld [vmem:[%s257 + $0xb0] sm:$0xff]
        %v334 = vld [vmem:[%s257 + $0xb8] sm:$0xff]
        %v335 = vld [vmem:[%s257 + $0xc0] sm:$0xff]
        %v336 = vld [vmem:[%s257 + $0xc8] sm:$0xff]
        %v337 = vld [vmem:[%s257 + $0xd0] sm:$0xff]
        %v338 = vld [vmem:[%s257 + $0xd8] sm:$0xff]
        %v339 = vld [vmem:[%s257 + $0xe0] sm:$0xff]
        %v340 = vld [vmem:[%s257 + $0xe8] sm:$0xff]
        %v341 = vld [vmem:[%s257 + $0xf0] sm:$0xff]
        %v342 = vld [vmem:[%s257 + $0xf8] sm:$0xff]
        %v343 = vpack.c.bf16 %v312, %v311
        %v344 = vpack.c.bf16 %v314, %v313
        %v345 = vpack.c.bf16 %v316, %v315
        %v346 = vpack.c.bf16 %v318, %v317
        %v347 = vpack.c.bf16 %v320, %v319
        %v348 = vpack.c.bf16 %v322, %v321
        %v349 = vpack.c.bf16 %v324, %v323
        %v350 = vpack.c.bf16 %v326, %v325
        %v351 = vpack.c.bf16 %v328, %v327
        %v352 = vpack.c.bf16 %v330, %v329
        %v353 = vpack.c.bf16 %v332, %v331
        %v354 = vpack.c.bf16 %v334, %v333
        %v355 = vpack.c.bf16 %v336, %v335
        %v356 = vpack.c.bf16 %v338, %v337
        %v357 = vpack.c.bf16 %v340, %v339
        %v358 = vpack.c.bf16 %v342, %v341
        %v359 = vld [vmem:[#allocation5] sm:$0xff]
        %v360 = vld [vmem:[#allocation5 + $0x8] sm:$0xff]
        %v361 = vld [vmem:[#allocation5 + $0x10] sm:$0xff]
        %v362 = vld [vmem:[#allocation5 + $0x18] sm:$0xff]
        %v363 = vld [vmem:[#allocation5 + $0x20] sm:$0xff]
        %v364 = vld [vmem:[#allocation5 + $0x28] sm:$0xff]
        %v365 = vld [vmem:[#allocation5 + $0x30] sm:$0xff]
        %v366 = vld [vmem:[#allocation5 + $0x38] sm:$0xff]
        %v367 = vld [vmem:[#allocation5 + $0x40] sm:$0xff]
        %v368 = vld [vmem:[#allocation5 + $0x48] sm:$0xff]
        %v369 = vld [vmem:[#allocation5 + $0x50] sm:$0xff]
        %v370 = vld [vmem:[#allocation5 + $0x58] sm:$0xff]
        %v371 = vld [vmem:[#allocation5 + $0x60] sm:$0xff]
        %v372 = vld [vmem:[#allocation5 + $0x68] sm:$0xff]
        %v373 = vld [vmem:[#allocation5 + $0x70] sm:$0xff]
        %v374 = vld [vmem:[#allocation5 + $0x78] sm:$0xff]
        %v375 = vld [vmem:[#allocation5 + $0x80] sm:$0xff]
        %v376 = vld [vmem:[#allocation5 + $0x88] sm:$0xff]
        %v377 = vld [vmem:[#allocation5 + $0x90] sm:$0xff]
        %v378 = vld [vmem:[#allocation5 + $0x98] sm:$0xff]
        %v379 = vld [vmem:[#allocation5 + $0xa0] sm:$0xff]
        %v380 = vld [vmem:[#allocation5 + $0xa8] sm:$0xff]
        %v381 = vld [vmem:[#allocation5 + $0xb0] sm:$0xff]
        %v382 = vld [vmem:[#allocation5 + $0xb8] sm:$0xff]
        %v383 = vld [vmem:[#allocation5 + $0xc0] sm:$0xff]
        %v384 = vld [vmem:[#allocation5 + $0xc8] sm:$0xff]
        %v385 = vld [vmem:[#allocation5 + $0xd0] sm:$0xff]
        %v386 = vld [vmem:[#allocation5 + $0xd8] sm:$0xff]
        %v387 = vld [vmem:[#allocation5 + $0xe0] sm:$0xff]
        %v388 = vld [vmem:[#allocation5 + $0xe8] sm:$0xff]
        %v389 = vld [vmem:[#allocation5 + $0xf0] sm:$0xff]
        %v390 = vld [vmem:[#allocation5 + $0xf8] sm:$0xff]
        %v391 = vld [vmem:[#allocation7] sm:$0xf]
        %v393 = vperm.slane %v391, 0
        %v394 = vperm.slane %v391, 1
        %v395 = vperm.slane %v391, 2
        %v396 = vperm.slane %v391, 3
        %v433 = vunpack.c.l.b16 %v359
        %v434 = vunpack.c.h.b16 %v359
        %v435 = vunpack.c.l.b16 %v360
        %v436 = vunpack.c.h.b16 %v360
        %v437 = vunpack.c.l.b16 %v361
        %v438 = vunpack.c.h.b16 %v361
        %v439 = vunpack.c.l.b16 %v362
        %v440 = vunpack.c.h.b16 %v362
        %v441 = vunpack.c.l.b16 %v363
        %v442 = vunpack.c.h.b16 %v363
        %v443 = vunpack.c.l.b16 %v364
        %v444 = vunpack.c.h.b16 %v364
        %v445 = vunpack.c.l.b16 %v365
        %v446 = vunpack.c.h.b16 %v365
        %v447 = vunpack.c.l.b16 %v366
        %v448 = vunpack.c.h.b16 %v366
        %v449 = vunpack.c.l.b16 %v367
        %v450 = vunpack.c.h.b16 %v367
        %v451 = vunpack.c.l.b16 %v368
        %v452 = vunpack.c.h.b16 %v368
        %v453 = vunpack.c.l.b16 %v369
        %v454 = vunpack.c.h.b16 %v369
        %v455 = vunpack.c.l.b16 %v370
        %v456 = vunpack.c.h.b16 %v370
        %v457 = vunpack.c.l.b16 %v371
        %v458 = vunpack.c.h.b16 %v371
        %v459 = vunpack.c.l.b16 %v372
        %v460 = vunpack.c.h.b16 %v372
        %v461 = vunpack.c.l.b16 %v373
        %v462 = vunpack.c.h.b16 %v373
        %v463 = vunpack.c.l.b16 %v374
        %v464 = vunpack.c.h.b16 %v374
        %v465 = vunpack.c.l.b16 %v375
        %v466 = vunpack.c.h.b16 %v375
        %v467 = vunpack.c.l.b16 %v376
        %v468 = vunpack.c.h.b16 %v376
        %v469 = vunpack.c.l.b16 %v377
        %v470 = vunpack.c.h.b16 %v377
        %v471 = vunpack.c.l.b16 %v378
        %v472 = vunpack.c.h.b16 %v378
        %v473 = vunpack.c.l.b16 %v379
        %v474 = vunpack.c.h.b16 %v379
        %v475 = vunpack.c.l.b16 %v380
        %v476 = vunpack.c.h.b16 %v380
        %v477 = vunpack.c.l.b16 %v381
        %v478 = vunpack.c.h.b16 %v381
        %v479 = vunpack.c.l.b16 %v382
        %v480 = vunpack.c.h.b16 %v382
        %v481 = vunpack.c.l.b16 %v383
        %v482 = vunpack.c.h.b16 %v383
        %v483 = vunpack.c.l.b16 %v384
        %v484 = vunpack.c.h.b16 %v384
        %v485 = vunpack.c.l.b16 %v385
        %v486 = vunpack.c.h.b16 %v385
        %v487 = vunpack.c.l.b16 %v386
        %v488 = vunpack.c.h.b16 %v386
        %v489 = vunpack.c.l.b16 %v387
        %v490 = vunpack.c.h.b16 %v387
        %v491 = vunpack.c.l.b16 %v388
        %v492 = vunpack.c.h.b16 %v388
        %v493 = vunpack.c.l.b16 %v389
        %v494 = vunpack.c.h.b16 %v389
        %v495 = vunpack.c.l.b16 %v390
        %v496 = vunpack.c.h.b16 %v390
        %v497 = vpack.c.b16 %v437, %v433
        %v498 = vpack.c.b16 %v438, %v434
        %v499 = vpack.c.b16 %v439, %v435
        %v500 = vpack.c.b16 %v440, %v436
        %v501 = vpack.c.b16 %v445, %v441
        %v502 = vpack.c.b16 %v446, %v442
        %v503 = vpack.c.b16 %v447, %v443
        %v504 = vpack.c.b16 %v448, %v444
        %v505 = vpack.c.b16 %v453, %v449
        %v506 = vpack.c.b16 %v454, %v450
        %v507 = vpack.c.b16 %v455, %v451
        %v508 = vpack.c.b16 %v456, %v452
        %v509 = vpack.c.b16 %v461, %v457
        %v510 = vpack.c.b16 %v462, %v458
        %v511 = vpack.c.b16 %v463, %v459
        %v512 = vpack.c.b16 %v464, %v460
        %v513 = vpack.c.b16 %v469, %v465
        %v514 = vpack.c.b16 %v470, %v466
        %v515 = vpack.c.b16 %v471, %v467
        %v516 = vpack.c.b16 %v472, %v468
        %v517 = vpack.c.b16 %v477, %v473
        %v518 = vpack.c.b16 %v478, %v474
        %v519 = vpack.c.b16 %v479, %v475
        %v520 = vpack.c.b16 %v480, %v476
        %v521 = vpack.c.b16 %v485, %v481
        %v522 = vpack.c.b16 %v486, %v482
        %v523 = vpack.c.b16 %v487, %v483
        %v524 = vpack.c.b16 %v488, %v484
        %v525 = vpack.c.b16 %v493, %v489
        %v526 = vpack.c.b16 %v494, %v490
        %v527 = vpack.c.b16 %v495, %v491
        %v528 = vpack.c.b16 %v496, %v492
        %561 = vmatpush.bf16.msra.mxu0 %v525
        %562 = vmatpush.bf16.msra.mxu0 %v521
        %563 = vmatpush.bf16.msra.mxu0 %v517
        %564 = vmatpush.bf16.msra.mxu0 %v513
        %565 = vmatpush.bf16.msra.mxu0 %v509
        %566 = vmatpush.bf16.msra.mxu0 %v505
        %567 = vmatpush.bf16.msra.mxu0 %v501
        %568 = vmatpush.bf16.msra.mxu0 %v497
        %569 = vmatmul.bf16.gmra.mxu0 %v343
        %v570 = vpop.f32.mrf.mxu0
        %v571 = vadd.f32 %v393, %v570
        %v572 = vpop.f32.mrf.mxu0
        %v573 = vadd.f32 %v393, %v572
        %574 = vmatmul.bf16.gmra.mxu0 %v344
        %v575 = vpop.f32.mrf.mxu0
        %v576 = vadd.f32 %v393, %v575
        %v577 = vpop.f32.mrf.mxu0
        %v578 = vadd.f32 %v393, %v577
        %579 = vmatmul.bf16.gmra.mxu0 %v345
        %v580 = vpop.f32.mrf.mxu0
        %v581 = vadd.f32 %v393, %v580
        %v582 = vpop.f32.mrf.mxu0
        %v583 = vadd.f32 %v393, %v582
        %584 = vmatmul.bf16.gmra.mxu0 %v346
        %v585 = vpop.f32.mrf.mxu0
        %v586 = vadd.f32 %v393, %v585
        %v587 = vpop.f32.mrf.mxu0
        %v588 = vadd.f32 %v393, %v587
        %589 = vmatmul.bf16.gmra.mxu0 %v347
        %v590 = vpop.f32.mrf.mxu0
        %v591 = vadd.f32 %v393, %v590
        %v592 = vpop.f32.mrf.mxu0
        %v593 = vadd.f32 %v393, %v592
        %594 = vmatmul.bf16.gmra.mxu0 %v348
        %v595 = vpop.f32.mrf.mxu0
        %v596 = vadd.f32 %v393, %v595
        %v597 = vpop.f32.mrf.mxu0
        %v598 = vadd.f32 %v393, %v597
        %599 = vmatmul.bf16.gmra.mxu0 %v349
        %v600 = vpop.f32.mrf.mxu0
        %v601 = vadd.f32 %v393, %v600
        %v602 = vpop.f32.mrf.mxu0
        %v603 = vadd.f32 %v393, %v602
        %604 = vmatmul.bf16.gmra.mxu0 %v350
        %v605 = vpop.f32.mrf.mxu0
        %v606 = vadd.f32 %v393, %v605
        %v607 = vpop.f32.mrf.mxu0
        %v608 = vadd.f32 %v393, %v607
        %609 = vmatmul.bf16.gmra.mxu0 %v351
        %v610 = vpop.f32.mrf.mxu0
        %v611 = vadd.f32 %v393, %v610
        %v612 = vpop.f32.mrf.mxu0
        %v613 = vadd.f32 %v393, %v612
        %614 = vmatmul.bf16.gmra.mxu0 %v352
        %v615 = vpop.f32.mrf.mxu0
        %v616 = vadd.f32 %v393, %v615
        %v617 = vpop.f32.mrf.mxu0
        %v618 = vadd.f32 %v393, %v617
        %619 = vmatmul.bf16.gmra.mxu0 %v353
        %v620 = vpop.f32.mrf.mxu0
        %v621 = vadd.f32 %v393, %v620
        %v622 = vpop.f32.mrf.mxu0
        %v623 = vadd.f32 %v393, %v622
        %624 = vmatmul.bf16.gmra.mxu0 %v354
        %v625 = vpop.f32.mrf.mxu0
        %v626 = vadd.f32 %v393, %v625
        %v627 = vpop.f32.mrf.mxu0
        %v628 = vadd.f32 %v393, %v627
        %629 = vmatmul.bf16.gmra.mxu0 %v355
        %v630 = vpop.f32.mrf.mxu0
        %v631 = vadd.f32 %v393, %v630
        %v632 = vpop.f32.mrf.mxu0
        %v633 = vadd.f32 %v393, %v632
        %634 = vmatmul.bf16.gmra.mxu0 %v356
        %v635 = vpop.f32.mrf.mxu0
        %v636 = vadd.f32 %v393, %v635
        %v637 = vpop.f32.mrf.mxu0
        %v638 = vadd.f32 %v393, %v637
        %639 = vmatmul.bf16.gmra.mxu0 %v357
        %v640 = vpop.f32.mrf.mxu0
        %v641 = vadd.f32 %v393, %v640
        %v642 = vpop.f32.mrf.mxu0
        %v643 = vadd.f32 %v393, %v642
        %644 = vmatmul.bf16.gmra.mxu0 %v358
        %v645 = vpop.f32.mrf.mxu0
        %v646 = vadd.f32 %v393, %v645
        %v647 = vpop.f32.mrf.mxu0
        %v648 = vadd.f32 %v393, %v647
        %649 = vdwg.mxu0
        %650 = vmatpush.bf16.msra.mxu0 %v526
        %651 = vmatpush.bf16.msra.mxu0 %v522
        %652 = vmatpush.bf16.msra.mxu0 %v518
        %653 = vmatpush.bf16.msra.mxu0 %v514
        %654 = vmatpush.bf16.msra.mxu0 %v510
        %655 = vmatpush.bf16.msra.mxu0 %v506
        %656 = vmatpush.bf16.msra.mxu0 %v502
        %657 = vmatpush.bf16.msra.mxu0 %v498
        %658 = vmatmul.bf16.gmra.mxu0 %v343
        %v659 = vpop.f32.mrf.mxu0
        %v660 = vadd.f32 %v394, %v659
        %v661 = vpop.f32.mrf.mxu0
        %v662 = vadd.f32 %v394, %v661
        %663 = vmatmul.bf16.gmra.mxu0 %v344
        %v664 = vpop.f32.mrf.mxu0
        %v665 = vadd.f32 %v394, %v664
        %v666 = vpop.f32.mrf.mxu0
        %v667 = vadd.f32 %v394, %v666
        %668 = vmatmul.bf16.gmra.mxu0 %v345
        %v669 = vpop.f32.mrf.mxu0
        %v670 = vadd.f32 %v394, %v669
        %v671 = vpop.f32.mrf.mxu0
        %v672 = vadd.f32 %v394, %v671
        %673 = vmatmul.bf16.gmra.mxu0 %v346
        %v674 = vpop.f32.mrf.mxu0
        %v675 = vadd.f32 %v394, %v674
        %v676 = vpop.f32.mrf.mxu0
        %v677 = vadd.f32 %v394, %v676
        %678 = vmatmul.bf16.gmra.mxu0 %v347
        %v679 = vpop.f32.mrf.mxu0
        %v680 = vadd.f32 %v394, %v679
        %v681 = vpop.f32.mrf.mxu0
        %v682 = vadd.f32 %v394, %v681
        %683 = vmatmul.bf16.gmra.mxu0 %v348
        %v684 = vpop.f32.mrf.mxu0
        %v685 = vadd.f32 %v394, %v684
        %v686 = vpop.f32.mrf.mxu0
        %v687 = vadd.f32 %v394, %v686
        %688 = vmatmul.bf16.gmra.mxu0 %v349
        %v689 = vpop.f32.mrf.mxu0
        %v690 = vadd.f32 %v394, %v689
        %v691 = vpop.f32.mrf.mxu0
        %v692 = vadd.f32 %v394, %v691
        %693 = vmatmul.bf16.gmra.mxu0 %v350
        %v694 = vpop.f32.mrf.mxu0
        %v695 = vadd.f32 %v394, %v694
        %v696 = vpop.f32.mrf.mxu0
        %v697 = vadd.f32 %v394, %v696
        %698 = vmatmul.bf16.gmra.mxu0 %v351
        %v699 = vpop.f32.mrf.mxu0
        %v700 = vadd.f32 %v394, %v699
        %v701 = vpop.f32.mrf.mxu0
        %v702 = vadd.f32 %v394, %v701
        %703 = vmatmul.bf16.gmra.mxu0 %v352
        %v704 = vpop.f32.mrf.mxu0
        %v705 = vadd.f32 %v394, %v704
        %v706 = vpop.f32.mrf.mxu0
        %v707 = vadd.f32 %v394, %v706
        %708 = vmatmul.bf16.gmra.mxu0 %v353
        %v709 = vpop.f32.mrf.mxu0
        %v710 = vadd.f32 %v394, %v709
        %v711 = vpop.f32.mrf.mxu0
        %v712 = vadd.f32 %v394, %v711
        %713 = vmatmul.bf16.gmra.mxu0 %v354
        %v714 = vpop.f32.mrf.mxu0
        %v715 = vadd.f32 %v394, %v714
        %v716 = vpop.f32.mrf.mxu0
        %v717 = vadd.f32 %v394, %v716
        %718 = vmatmul.bf16.gmra.mxu0 %v355
        %v719 = vpop.f32.mrf.mxu0
        %v720 = vadd.f32 %v394, %v719
        %v721 = vpop.f32.mrf.mxu0
        %v722 = vadd.f32 %v394, %v721
        %723 = vmatmul.bf16.gmra.mxu0 %v356
        %v724 = vpop.f32.mrf.mxu0
        %v725 = vadd.f32 %v394, %v724
        %v726 = vpop.f32.mrf.mxu0
        %v727 = vadd.f32 %v394, %v726
        %728 = vmatmul.bf16.gmra.mxu0 %v357
        %v729 = vpop.f32.mrf.mxu0
        %v730 = vadd.f32 %v394, %v729
        %v731 = vpop.f32.mrf.mxu0
        %v732 = vadd.f32 %v394, %v731
        %733 = vmatmul.bf16.gmra.mxu0 %v358
        %v734 = vpop.f32.mrf.mxu0
        %v735 = vadd.f32 %v394, %v734
        %v736 = vpop.f32.mrf.mxu0
        %v737 = vadd.f32 %v394, %v736
        %738 = vdwg.mxu0
        %739 = vmatpush.bf16.msra.mxu0 %v527
        %740 = vmatpush.bf16.msra.mxu0 %v523
        %741 = vmatpush.bf16.msra.mxu0 %v519
        %742 = vmatpush.bf16.msra.mxu0 %v515
        %743 = vmatpush.bf16.msra.mxu0 %v511
        %744 = vmatpush.bf16.msra.mxu0 %v507
        %745 = vmatpush.bf16.msra.mxu0 %v503
        %746 = vmatpush.bf16.msra.mxu0 %v499
        %747 = vmatmul.bf16.gmra.mxu0 %v343
        %v748 = vpop.f32.mrf.mxu0
        %v749 = vadd.f32 %v395, %v748
        %v750 = vpop.f32.mrf.mxu0
        %v751 = vadd.f32 %v395, %v750
        %752 = vmatmul.bf16.gmra.mxu0 %v344
        %v753 = vpop.f32.mrf.mxu0
        %v754 = vadd.f32 %v395, %v753
        %v755 = vpop.f32.mrf.mxu0
        %v756 = vadd.f32 %v395, %v755
        %757 = vmatmul.bf16.gmra.mxu0 %v345
        %v758 = vpop.f32.mrf.mxu0
        %v759 = vadd.f32 %v395, %v758
        %v760 = vpop.f32.mrf.mxu0
        %v761 = vadd.f32 %v395, %v760
        %762 = vmatmul.bf16.gmra.mxu0 %v346
        %v763 = vpop.f32.mrf.mxu0
        %v764 = vadd.f32 %v395, %v763
        %v765 = vpop.f32.mrf.mxu0
        %v766 = vadd.f32 %v395, %v765
        %767 = vmatmul.bf16.gmra.mxu0 %v347
        %v768 = vpop.f32.mrf.mxu0
        %v769 = vadd.f32 %v395, %v768
        %v770 = vpop.f32.mrf.mxu0
        %v771 = vadd.f32 %v395, %v770
        %772 = vmatmul.bf16.gmra.mxu0 %v348
        %v773 = vpop.f32.mrf.mxu0
        %v774 = vadd.f32 %v395, %v773
        %v775 = vpop.f32.mrf.mxu0
        %v776 = vadd.f32 %v395, %v775
        %777 = vmatmul.bf16.gmra.mxu0 %v349
        %v778 = vpop.f32.mrf.mxu0
        %v779 = vadd.f32 %v395, %v778
        %v780 = vpop.f32.mrf.mxu0
        %v781 = vadd.f32 %v395, %v780
        %782 = vmatmul.bf16.gmra.mxu0 %v350
        %v783 = vpop.f32.mrf.mxu0
        %v784 = vadd.f32 %v395, %v783
        %v785 = vpop.f32.mrf.mxu0
        %v786 = vadd.f32 %v395, %v785
        %787 = vmatmul.bf16.gmra.mxu0 %v351
        %v788 = vpop.f32.mrf.mxu0
        %v789 = vadd.f32 %v395, %v788
        %v790 = vpop.f32.mrf.mxu0
        %v791 = vadd.f32 %v395, %v790
        %792 = vmatmul.bf16.gmra.mxu0 %v352
        %v793 = vpop.f32.mrf.mxu0
        %v794 = vadd.f32 %v395, %v793
        %v795 = vpop.f32.mrf.mxu0
        %v796 = vadd.f32 %v395, %v795
        %797 = vmatmul.bf16.gmra.mxu0 %v353
        %v798 = vpop.f32.mrf.mxu0
        %v799 = vadd.f32 %v395, %v798
        %v800 = vpop.f32.mrf.mxu0
        %v801 = vadd.f32 %v395, %v800
        %802 = vmatmul.bf16.gmra.mxu0 %v354
        %v803 = vpop.f32.mrf.mxu0
        %v804 = vadd.f32 %v395, %v803
        %v805 = vpop.f32.mrf.mxu0
        %v806 = vadd.f32 %v395, %v805
        %807 = vmatmul.bf16.gmra.mxu0 %v355
        %v808 = vpop.f32.mrf.mxu0
        %v809 = vadd.f32 %v395, %v808
        %v810 = vpop.f32.mrf.mxu0
        %v811 = vadd.f32 %v395, %v810
        %812 = vmatmul.bf16.gmra.mxu0 %v356
        %v813 = vpop.f32.mrf.mxu0
        %v814 = vadd.f32 %v395, %v813
        %v815 = vpop.f32.mrf.mxu0
        %v816 = vadd.f32 %v395, %v815
        %817 = vmatmul.bf16.gmra.mxu0 %v357
        %v818 = vpop.f32.mrf.mxu0
        %v819 = vadd.f32 %v395, %v818
        %v820 = vpop.f32.mrf.mxu0
        %v821 = vadd.f32 %v395, %v820
        %822 = vmatmul.bf16.gmra.mxu0 %v358
        %v823 = vpop.f32.mrf.mxu0
        %v824 = vadd.f32 %v395, %v823
        %v825 = vpop.f32.mrf.mxu0
        %v826 = vadd.f32 %v395, %v825
        %827 = vdwg.mxu0
        %828 = vmatpush.bf16.msra.mxu0 %v528
        %829 = vmatpush.bf16.msra.mxu0 %v524
        %830 = vmatpush.bf16.msra.mxu0 %v520
        %831 = vmatpush.bf16.msra.mxu0 %v516
        %832 = vmatpush.bf16.msra.mxu0 %v512
        %833 = vmatpush.bf16.msra.mxu0 %v508
        %834 = vmatpush.bf16.msra.mxu0 %v504
        %835 = vmatpush.bf16.msra.mxu0 %v500
        %836 = vmatmul.bf16.gmra.mxu0 %v343
        %v837 = vpop.f32.mrf.mxu0
        %v838 = vadd.f32 %v396, %v837
        %v839 = vpop.f32.mrf.mxu0
        %v840 = vadd.f32 %v396, %v839
        %841 = vmatmul.bf16.gmra.mxu0 %v344
        %v842 = vpop.f32.mrf.mxu0
        %v843 = vadd.f32 %v396, %v842
        %v844 = vpop.f32.mrf.mxu0
        %v845 = vadd.f32 %v396, %v844
        %846 = vmatmul.bf16.gmra.mxu0 %v345
        %v847 = vpop.f32.mrf.mxu0
        %v848 = vadd.f32 %v396, %v847
        %v849 = vpop.f32.mrf.mxu0
        %v850 = vadd.f32 %v396, %v849
        %851 = vmatmul.bf16.gmra.mxu0 %v346
        %v852 = vpop.f32.mrf.mxu0
        %v853 = vadd.f32 %v396, %v852
        %v854 = vpop.f32.mrf.mxu0
        %v855 = vadd.f32 %v396, %v854
        %856 = vmatmul.bf16.gmra.mxu0 %v347
        %v857 = vpop.f32.mrf.mxu0
        %v858 = vadd.f32 %v396, %v857
        %v859 = vpop.f32.mrf.mxu0
        %v860 = vadd.f32 %v396, %v859
        %861 = vmatmul.bf16.gmra.mxu0 %v348
        %v862 = vpop.f32.mrf.mxu0
        %v863 = vadd.f32 %v396, %v862
        %v864 = vpop.f32.mrf.mxu0
        %v865 = vadd.f32 %v396, %v864
        %866 = vmatmul.bf16.gmra.mxu0 %v349
        %v867 = vpop.f32.mrf.mxu0
        %v868 = vadd.f32 %v396, %v867
        %v869 = vpop.f32.mrf.mxu0
        %v870 = vadd.f32 %v396, %v869
        %871 = vmatmul.bf16.gmra.mxu0 %v350
        %v872 = vpop.f32.mrf.mxu0
        %v873 = vadd.f32 %v396, %v872
        %v874 = vpop.f32.mrf.mxu0
        %v875 = vadd.f32 %v396, %v874
        %876 = vmatmul.bf16.gmra.mxu0 %v351
        %v877 = vpop.f32.mrf.mxu0
        %v878 = vadd.f32 %v396, %v877
        %v879 = vpop.f32.mrf.mxu0
        %v880 = vadd.f32 %v396, %v879
        %881 = vmatmul.bf16.gmra.mxu0 %v352
        %v882 = vpop.f32.mrf.mxu0
        %v883 = vadd.f32 %v396, %v882
        %v884 = vpop.f32.mrf.mxu0
        %v885 = vadd.f32 %v396, %v884
        %886 = vmatmul.bf16.gmra.mxu0 %v353
        %v887 = vpop.f32.mrf.mxu0
        %v888 = vadd.f32 %v396, %v887
        %v889 = vpop.f32.mrf.mxu0
        %v890 = vadd.f32 %v396, %v889
        %891 = vmatmul.bf16.gmra.mxu0 %v354
        %v892 = vpop.f32.mrf.mxu0
        %v893 = vadd.f32 %v396, %v892
        %v894 = vpop.f32.mrf.mxu0
        %v895 = vadd.f32 %v396, %v894
        %896 = vmatmul.bf16.gmra.mxu0 %v355
        %v897 = vpop.f32.mrf.mxu0
        %v898 = vadd.f32 %v396, %v897
        %v899 = vpop.f32.mrf.mxu0
        %v900 = vadd.f32 %v396, %v899
        %901 = vmatmul.bf16.gmra.mxu0 %v356
        %v902 = vpop.f32.mrf.mxu0
        %v903 = vadd.f32 %v396, %v902
        %v904 = vpop.f32.mrf.mxu0
        %v905 = vadd.f32 %v396, %v904
        %906 = vmatmul.bf16.gmra.mxu0 %v357
        %v907 = vpop.f32.mrf.mxu0
        %v908 = vadd.f32 %v396, %v907
        %v909 = vpop.f32.mrf.mxu0
        %v910 = vadd.f32 %v396, %v909
        %911 = vmatmul.bf16.gmra.mxu0 %v358
        %v912 = vpop.f32.mrf.mxu0
        %v913 = vadd.f32 %v396, %v912
        %v914 = vpop.f32.mrf.mxu0
        %v915 = vadd.f32 %v396, %v914
        %916 = vdwg.mxu0
        %v917 = vmax.f32 %v571, 0.0
        %v918 = vmax.f32 %v660, 0.0
        %v919 = vmax.f32 %v749, 0.0
        %v920 = vmax.f32 %v838, 0.0
        %v921 = vmax.f32 %v573, 0.0
        %v922 = vmax.f32 %v662, 0.0
        %v923 = vmax.f32 %v751, 0.0
        %v924 = vmax.f32 %v840, 0.0
        %v925 = vmax.f32 %v576, 0.0
        %v926 = vmax.f32 %v665, 0.0
        %v927 = vmax.f32 %v754, 0.0
        %v928 = vmax.f32 %v843, 0.0
        %v929 = vmax.f32 %v578, 0.0
        %v930 = vmax.f32 %v667, 0.0
        %v931 = vmax.f32 %v756, 0.0
        %v932 = vmax.f32 %v845, 0.0
        %v933 = vmax.f32 %v581, 0.0
        %v934 = vmax.f32 %v670, 0.0
        %v935 = vmax.f32 %v759, 0.0
        %v936 = vmax.f32 %v848, 0.0
        %v937 = vmax.f32 %v583, 0.0
        %v938 = vmax.f32 %v672, 0.0
        %v939 = vmax.f32 %v761, 0.0
        %v940 = vmax.f32 %v850, 0.0
        %v941 = vmax.f32 %v586, 0.0
        %v942 = vmax.f32 %v675, 0.0
        %v943 = vmax.f32 %v764, 0.0
        %v944 = vmax.f32 %v853, 0.0
        %v945 = vmax.f32 %v588, 0.0
        %v946 = vmax.f32 %v677, 0.0
        %v947 = vmax.f32 %v766, 0.0
        %v948 = vmax.f32 %v855, 0.0
        %v949 = vmax.f32 %v591, 0.0
        %v950 = vmax.f32 %v680, 0.0
        %v951 = vmax.f32 %v769, 0.0
        %v952 = vmax.f32 %v858, 0.0
        %v953 = vmax.f32 %v593, 0.0
        %v954 = vmax.f32 %v682, 0.0
        %v955 = vmax.f32 %v771, 0.0
        %v956 = vmax.f32 %v860, 0.0
        %v957 = vmax.f32 %v596, 0.0
        %v958 = vmax.f32 %v685, 0.0
        %v959 = vmax.f32 %v774, 0.0
        %v960 = vmax.f32 %v863, 0.0
        %v961 = vmax.f32 %v598, 0.0
        %v962 = vmax.f32 %v687, 0.0
        %v963 = vmax.f32 %v776, 0.0
        %v964 = vmax.f32 %v865, 0.0
        %v965 = vmax.f32 %v601, 0.0
        %v966 = vmax.f32 %v690, 0.0
        %v967 = vmax.f32 %v779, 0.0
        %v968 = vmax.f32 %v868, 0.0
        %v969 = vmax.f32 %v603, 0.0
        %v970 = vmax.f32 %v692, 0.0
        %v971 = vmax.f32 %v781, 0.0
        %v972 = vmax.f32 %v870, 0.0
        %v973 = vmax.f32 %v606, 0.0
        %v974 = vmax.f32 %v695, 0.0
        %v975 = vmax.f32 %v784, 0.0
        %v976 = vmax.f32 %v873, 0.0
        %v977 = vmax.f32 %v608, 0.0
        %v978 = vmax.f32 %v697, 0.0
        %v979 = vmax.f32 %v786, 0.0
        %v980 = vmax.f32 %v875, 0.0
        %v981 = vmax.f32 %v611, 0.0
        %v982 = vmax.f32 %v700, 0.0
        %v983 = vmax.f32 %v789, 0.0
        %v984 = vmax.f32 %v878, 0.0
        %v985 = vmax.f32 %v613, 0.0
        %v986 = vmax.f32 %v702, 0.0
        %v987 = vmax.f32 %v791, 0.0
        %v988 = vmax.f32 %v880, 0.0
        %v989 = vmax.f32 %v616, 0.0
        %v990 = vmax.f32 %v705, 0.0
        %v991 = vmax.f32 %v794, 0.0
        %v992 = vmax.f32 %v883, 0.0
        %v993 = vmax.f32 %v618, 0.0
        %v994 = vmax.f32 %v707, 0.0
        %v995 = vmax.f32 %v796, 0.0
        %v996 = vmax.f32 %v885, 0.0
        %v997 = vmax.f32 %v621, 0.0
        %v998 = vmax.f32 %v710, 0.0
        %v999 = vmax.f32 %v799, 0.0
        %v1000 = vmax.f32 %v888, 0.0
        %v1001 = vmax.f32 %v623, 0.0
        %v1002 = vmax.f32 %v712, 0.0
        %v1003 = vmax.f32 %v801, 0.0
        %v1004 = vmax.f32 %v890, 0.0
        %v1005 = vmax.f32 %v626, 0.0
        %v1006 = vmax.f32 %v715, 0.0
        %v1007 = vmax.f32 %v804, 0.0
        %v1008 = vmax.f32 %v893, 0.0
        %v1009 = vmax.f32 %v628, 0.0
        %v1010 = vmax.f32 %v717, 0.0
        %v1011 = vmax.f32 %v806, 0.0
        %v1012 = vmax.f32 %v895, 0.0
        %v1013 = vmax.f32 %v631, 0.0
        %v1014 = vmax.f32 %v720, 0.0
        %v1015 = vmax.f32 %v809, 0.0
        %v1016 = vmax.f32 %v898, 0.0
        %v1017 = vmax.f32 %v633, 0.0
        %v1018 = vmax.f32 %v722, 0.0
        %v1019 = vmax.f32 %v811, 0.0
        %v1020 = vmax.f32 %v900, 0.0
        %v1021 = vmax.f32 %v636, 0.0
        %v1022 = vmax.f32 %v725, 0.0
        %v1023 = vmax.f32 %v814, 0.0
        %v1024 = vmax.f32 %v903, 0.0
        %v1025 = vmax.f32 %v638, 0.0
        %v1026 = vmax.f32 %v727, 0.0
        %v1027 = vmax.f32 %v816, 0.0
        %v1028 = vmax.f32 %v905, 0.0
        %v1029 = vmax.f32 %v641, 0.0
        %v1030 = vmax.f32 %v730, 0.0
        %v1031 = vmax.f32 %v819, 0.0
        %v1032 = vmax.f32 %v908, 0.0
        %v1033 = vmax.f32 %v643, 0.0
        %v1034 = vmax.f32 %v732, 0.0
        %v1035 = vmax.f32 %v821, 0.0
        %v1036 = vmax.f32 %v910, 0.0
        %v1037 = vmax.f32 %v646, 0.0
        %v1038 = vmax.f32 %v735, 0.0
        %v1039 = vmax.f32 %v824, 0.0
        %v1040 = vmax.f32 %v913, 0.0
        %v1041 = vmax.f32 %v648, 0.0
        %v1042 = vmax.f32 %v737, 0.0
        %v1043 = vmax.f32 %v826, 0.0
        %v1044 = vmax.f32 %v915, 0.0
        %v1045 = vpack.c.bf16 %v921, %v917
        %v1046 = vpack.c.bf16 %v922, %v918
        %v1047 = vpack.c.bf16 %v923, %v919
        %v1048 = vpack.c.bf16 %v924, %v920
        %v1049 = vpack.c.bf16 %v929, %v925
        %v1050 = vpack.c.bf16 %v930, %v926
        %v1051 = vpack.c.bf16 %v931, %v927
        %v1052 = vpack.c.bf16 %v932, %v928
        %v1053 = vpack.c.bf16 %v937, %v933
        %v1054 = vpack.c.bf16 %v938, %v934
        %v1055 = vpack.c.bf16 %v939, %v935
        %v1056 = vpack.c.bf16 %v940, %v936
        %v1057 = vpack.c.bf16 %v945, %v941
        %v1058 = vpack.c.bf16 %v946, %v942
        %v1059 = vpack.c.bf16 %v947, %v943
        %v1060 = vpack.c.bf16 %v948, %v944
        %v1061 = vpack.c.bf16 %v953, %v949
        %v1062 = vpack.c.bf16 %v954, %v950
        %v1063 = vpack.c.bf16 %v955, %v951
        %v1064 = vpack.c.bf16 %v956, %v952
        %v1065 = vpack.c.bf16 %v961, %v957
        %v1066 = vpack.c.bf16 %v962, %v958
        %v1067 = vpack.c.bf16 %v963, %v959
        %v1068 = vpack.c.bf16 %v964, %v960
        %v1069 = vpack.c.bf16 %v969, %v965
        %v1070 = vpack.c.bf16 %v970, %v966
        %v1071 = vpack.c.bf16 %v971, %v967
        %v1072 = vpack.c.bf16 %v972, %v968
        %v1073 = vpack.c.bf16 %v977, %v973
        %v1074 = vpack.c.bf16 %v978, %v974
        %v1075 = vpack.c.bf16 %v979, %v975
        %v1076 = vpack.c.bf16 %v980, %v976
        %v1077 = vpack.c.bf16 %v985, %v981
        %v1078 = vpack.c.bf16 %v986, %v982
        %v1079 = vpack.c.bf16 %v987, %v983
        %v1080 = vpack.c.bf16 %v988, %v984
        %v1081 = vpack.c.bf16 %v993, %v989
        %v1082 = vpack.c.bf16 %v994, %v990
        %v1083 = vpack.c.bf16 %v995, %v991
        %v1084 = vpack.c.bf16 %v996, %v992
        %v1085 = vpack.c.bf16 %v1001, %v997
        %v1086 = vpack.c.bf16 %v1002, %v998
        %v1087 = vpack.c.bf16 %v1003, %v999
        %v1088 = vpack.c.bf16 %v1004, %v1000
        %v1089 = vpack.c.bf16 %v1009, %v1005
        %v1090 = vpack.c.bf16 %v1010, %v1006
        %v1091 = vpack.c.bf16 %v1011, %v1007
        %v1092 = vpack.c.bf16 %v1012, %v1008
        %v1093 = vpack.c.bf16 %v1017, %v1013
        %v1094 = vpack.c.bf16 %v1018, %v1014
        %v1095 = vpack.c.bf16 %v1019, %v1015
        %v1096 = vpack.c.bf16 %v1020, %v1016
        %v1097 = vpack.c.bf16 %v1025, %v1021
        %v1098 = vpack.c.bf16 %v1026, %v1022
        %v1099 = vpack.c.bf16 %v1027, %v1023
        %v1100 = vpack.c.bf16 %v1028, %v1024
        %v1101 = vpack.c.bf16 %v1033, %v1029
        %v1102 = vpack.c.bf16 %v1034, %v1030
        %v1103 = vpack.c.bf16 %v1035, %v1031
        %v1104 = vpack.c.bf16 %v1036, %v1032
        %v1105 = vpack.c.bf16 %v1041, %v1037
        %v1106 = vpack.c.bf16 %v1042, %v1038
        %v1107 = vpack.c.bf16 %v1043, %v1039
        %v1108 = vpack.c.bf16 %v1044, %v1040
        %v1109 = vld [vmem:[#allocation8] sm:$0xff]
        %v1110 = vld [vmem:[#allocation8 + $0x8] sm:$0xff]
        %v1111 = vld [vmem:[#allocation8 + $0x10] sm:$0xff]
        %v1112 = vld [vmem:[#allocation8 + $0x18] sm:$0xff]
        %v1113 = vld [vmem:[#allocation8 + $0x20] sm:$0xff]
        %v1114 = vld [vmem:[#allocation8 + $0x28] sm:$0xff]
        %v1115 = vld [vmem:[#allocation8 + $0x30] sm:$0xff]
        %v1116 = vld [vmem:[#allocation8 + $0x38] sm:$0xff]
        %v1117 = vld [vmem:[#allocation8 + $0x40] sm:$0xff]
        %v1118 = vld [vmem:[#allocation8 + $0x48] sm:$0xff]
        %v1119 = vld [vmem:[#allocation8 + $0x50] sm:$0xff]
        %v1120 = vld [vmem:[#allocation8 + $0x58] sm:$0xff]
        %v1121 = vld [vmem:[#allocation8 + $0x60] sm:$0xff]
        %v1122 = vld [vmem:[#allocation8 + $0x68] sm:$0xff]
        %v1123 = vld [vmem:[#allocation8 + $0x70] sm:$0xff]
        %v1124 = vld [vmem:[#allocation8 + $0x78] sm:$0xff]
        %v1125 = vld [vmem:[#allocation8 + $0x80] sm:$0xff]
        %v1126 = vld [vmem:[#allocation8 + $0x88] sm:$0xff]
        %v1127 = vld [vmem:[#allocation8 + $0x90] sm:$0xff]
        %v1128 = vld [vmem:[#allocation8 + $0x98] sm:$0xff]
        %v1129 = vld [vmem:[#allocation8 + $0xa0] sm:$0xff]
        %v1130 = vld [vmem:[#allocation8 + $0xa8] sm:$0xff]
        %v1131 = vld [vmem:[#allocation8 + $0xb0] sm:$0xff]
        %v1132 = vld [vmem:[#allocation8 + $0xb8] sm:$0xff]
        %v1133 = vld [vmem:[#allocation8 + $0xc0] sm:$0xff]
        %v1134 = vld [vmem:[#allocation8 + $0xc8] sm:$0xff]
        %v1135 = vld [vmem:[#allocation8 + $0xd0] sm:$0xff]
        %v1136 = vld [vmem:[#allocation8 + $0xd8] sm:$0xff]
        %v1137 = vld [vmem:[#allocation8 + $0xe0] sm:$0xff]
        %v1138 = vld [vmem:[#allocation8 + $0xe8] sm:$0xff]
        %v1139 = vld [vmem:[#allocation8 + $0xf0] sm:$0xff]
        %v1140 = vld [vmem:[#allocation8 + $0xf8] sm:$0xff]
        %v1141 = vld [vmem:[#allocation8 + $0x100] sm:$0xff]
        %v1142 = vld [vmem:[#allocation8 + $0x108] sm:$0xff]
        %v1143 = vld [vmem:[#allocation8 + $0x110] sm:$0xff]
        %v1144 = vld [vmem:[#allocation8 + $0x118] sm:$0xff]
        %v1145 = vld [vmem:[#allocation8 + $0x120] sm:$0xff]
        %v1146 = vld [vmem:[#allocation8 + $0x128] sm:$0xff]
        %v1147 = vld [vmem:[#allocation8 + $0x130] sm:$0xff]
        %v1148 = vld [vmem:[#allocation8 + $0x138] sm:$0xff]
        %v1149 = vld [vmem:[#allocation8 + $0x140] sm:$0xff]
        %v1150 = vld [vmem:[#allocation8 + $0x148] sm:$0xff]
        %v1151 = vld [vmem:[#allocation8 + $0x150] sm:$0xff]
        %v1152 = vld [vmem:[#allocation8 + $0x158] sm:$0xff]
        %v1153 = vld [vmem:[#allocation8 + $0x160] sm:$0xff]
        %v1154 = vld [vmem:[#allocation8 + $0x168] sm:$0xff]
        %v1155 = vld [vmem:[#allocation8 + $0x170] sm:$0xff]
        %v1156 = vld [vmem:[#allocation8 + $0x178] sm:$0xff]
        %v1157 = vld [vmem:[#allocation8 + $0x180] sm:$0xff]
        %v1158 = vld [vmem:[#allocation8 + $0x188] sm:$0xff]
        %v1159 = vld [vmem:[#allocation8 + $0x190] sm:$0xff]
        %v1160 = vld [vmem:[#allocation8 + $0x198] sm:$0xff]
        %v1161 = vld [vmem:[#allocation8 + $0x1a0] sm:$0xff]
        %v1162 = vld [vmem:[#allocation8 + $0x1a8] sm:$0xff]
        %v1163 = vld [vmem:[#allocation8 + $0x1b0] sm:$0xff]
        %v1164 = vld [vmem:[#allocation8 + $0x1b8] sm:$0xff]
        %v1165 = vld [vmem:[#allocation8 + $0x1c0] sm:$0xff]
        %v1166 = vld [vmem:[#allocation8 + $0x1c8] sm:$0xff]
        %v1167 = vld [vmem:[#allocation8 + $0x1d0] sm:$0xff]
        %v1168 = vld [vmem:[#allocation8 + $0x1d8] sm:$0xff]
        %v1169 = vld [vmem:[#allocation8 + $0x1e0] sm:$0xff]
        %v1170 = vld [vmem:[#allocation8 + $0x1e8] sm:$0xff]
        %v1171 = vld [vmem:[#allocation8 + $0x1f0] sm:$0xff]
        %v1172 = vld [vmem:[#allocation8 + $0x1f8] sm:$0xff]
        %v1173 = vld [vmem:[%s4] sm:$0x3]
        %v1175 = vperm.slane %v1173, 0
        %v1176 = vperm.slane %v1173, 1
        %v1243 = vunpack.c.l.b16 %v1109
        %v1244 = vunpack.c.h.b16 %v1109
        %v1245 = vunpack.c.l.b16 %v1110
        %v1246 = vunpack.c.h.b16 %v1110
        %v1247 = vunpack.c.l.b16 %v1111
        %v1248 = vunpack.c.h.b16 %v1111
        %v1249 = vunpack.c.l.b16 %v1112
        %v1250 = vunpack.c.h.b16 %v1112
        %v1251 = vunpack.c.l.b16 %v1113
        %v1252 = vunpack.c.h.b16 %v1113
        %v1253 = vunpack.c.l.b16 %v1114
        %v1254 = vunpack.c.h.b16 %v1114
        %v1255 = vunpack.c.l.b16 %v1115
        %v1256 = vunpack.c.h.b16 %v1115
        %v1257 = vunpack.c.l.b16 %v1116
        %v1258 = vunpack.c.h.b16 %v1116
        %v1259 = vunpack.c.l.b16 %v1117
        %v1260 = vunpack.c.h.b16 %v1117
        %v1261 = vunpack.c.l.b16 %v1118
        %v1262 = vunpack.c.h.b16 %v1118
        %v1263 = vunpack.c.l.b16 %v1119
        %v1264 = vunpack.c.h.b16 %v1119
        %v1265 = vunpack.c.l.b16 %v1120
        %v1266 = vunpack.c.h.b16 %v1120
        %v1267 = vunpack.c.l.b16 %v1121
        %v1268 = vunpack.c.h.b16 %v1121
        %v1269 = vunpack.c.l.b16 %v1122
        %v1270 = vunpack.c.h.b16 %v1122
        %v1271 = vunpack.c.l.b16 %v1123
        %v1272 = vunpack.c.h.b16 %v1123
        %v1273 = vunpack.c.l.b16 %v1124
        %v1274 = vunpack.c.h.b16 %v1124
        %v1275 = vunpack.c.l.b16 %v1125
        %v1276 = vunpack.c.h.b16 %v1125
        %v1277 = vunpack.c.l.b16 %v1126
        %v1278 = vunpack.c.h.b16 %v1126
        %v1279 = vunpack.c.l.b16 %v1127
        %v1280 = vunpack.c.h.b16 %v1127
        %v1281 = vunpack.c.l.b16 %v1128
        %v1282 = vunpack.c.h.b16 %v1128
        %v1283 = vunpack.c.l.b16 %v1129
        %v1284 = vunpack.c.h.b16 %v1129
        %v1285 = vunpack.c.l.b16 %v1130
        %v1286 = vunpack.c.h.b16 %v1130
        %v1287 = vunpack.c.l.b16 %v1131
        %v1288 = vunpack.c.h.b16 %v1131
        %v1289 = vunpack.c.l.b16 %v1132
        %v1290 = vunpack.c.h.b16 %v1132
        %v1291 = vunpack.c.l.b16 %v1133
        %v1292 = vunpack.c.h.b16 %v1133
        %v1293 = vunpack.c.l.b16 %v1134
        %v1294 = vunpack.c.h.b16 %v1134
        %v1295 = vunpack.c.l.b16 %v1135
        %v1296 = vunpack.c.h.b16 %v1135
        %v1297 = vunpack.c.l.b16 %v1136
        %v1298 = vunpack.c.h.b16 %v1136
        %v1299 = vunpack.c.l.b16 %v1137
        %v1300 = vunpack.c.h.b16 %v1137
        %v1301 = vunpack.c.l.b16 %v1138
        %v1302 = vunpack.c.h.b16 %v1138
        %v1303 = vunpack.c.l.b16 %v1139
        %v1304 = vunpack.c.h.b16 %v1139
        %v1305 = vunpack.c.l.b16 %v1140
        %v1306 = vunpack.c.h.b16 %v1140
        %v1307 = vunpack.c.l.b16 %v1141
        %v1308 = vunpack.c.h.b16 %v1141
        %v1309 = vunpack.c.l.b16 %v1142
        %v1310 = vunpack.c.h.b16 %v1142
        %v1311 = vunpack.c.l.b16 %v1143
        %v1312 = vunpack.c.h.b16 %v1143
        %v1313 = vunpack.c.l.b16 %v1144
        %v1314 = vunpack.c.h.b16 %v1144
        %v1315 = vunpack.c.l.b16 %v1145
        %v1316 = vunpack.c.h.b16 %v1145
        %v1317 = vunpack.c.l.b16 %v1146
        %v1318 = vunpack.c.h.b16 %v1146
        %v1319 = vunpack.c.l.b16 %v1147
        %v1320 = vunpack.c.h.b16 %v1147
        %v1321 = vunpack.c.l.b16 %v1148
        %v1322 = vunpack.c.h.b16 %v1148
        %v1323 = vunpack.c.l.b16 %v1149
        %v1324 = vunpack.c.h.b16 %v1149
        %v1325 = vunpack.c.l.b16 %v1150
        %v1326 = vunpack.c.h.b16 %v1150
        %v1327 = vunpack.c.l.b16 %v1151
        %v1328 = vunpack.c.h.b16 %v1151
        %v1329 = vunpack.c.l.b16 %v1152
        %v1330 = vunpack.c.h.b16 %v1152
        %v1331 = vunpack.c.l.b16 %v1153
        %v1332 = vunpack.c.h.b16 %v1153
        %v1333 = vunpack.c.l.b16 %v1154
        %v1334 = vunpack.c.h.b16 %v1154
        %v1335 = vunpack.c.l.b16 %v1155
        %v1336 = vunpack.c.h.b16 %v1155
        %v1337 = vunpack.c.l.b16 %v1156
        %v1338 = vunpack.c.h.b16 %v1156
        %v1339 = vunpack.c.l.b16 %v1157
        %v1340 = vunpack.c.h.b16 %v1157
        %v1341 = vunpack.c.l.b16 %v1158
        %v1342 = vunpack.c.h.b16 %v1158
        %v1343 = vunpack.c.l.b16 %v1159
        %v1344 = vunpack.c.h.b16 %v1159
        %v1345 = vunpack.c.l.b16 %v1160
        %v1346 = vunpack.c.h.b16 %v1160
        %v1347 = vunpack.c.l.b16 %v1161
        %v1348 = vunpack.c.h.b16 %v1161
        %v1349 = vunpack.c.l.b16 %v1162
        %v1350 = vunpack.c.h.b16 %v1162
        %v1351 = vunpack.c.l.b16 %v1163
        %v1352 = vunpack.c.h.b16 %v1163
        %v1353 = vunpack.c.l.b16 %v1164
        %v1354 = vunpack.c.h.b16 %v1164
        %v1355 = vunpack.c.l.b16 %v1165
        %v1356 = vunpack.c.h.b16 %v1165
        %v1357 = vunpack.c.l.b16 %v1166
        %v1358 = vunpack.c.h.b16 %v1166
        %v1359 = vunpack.c.l.b16 %v1167
        %v1360 = vunpack.c.h.b16 %v1167
        %v1361 = vunpack.c.l.b16 %v1168
        %v1362 = vunpack.c.h.b16 %v1168
        %v1363 = vunpack.c.l.b16 %v1169
        %v1364 = vunpack.c.h.b16 %v1169
        %v1365 = vunpack.c.l.b16 %v1170
        %v1366 = vunpack.c.h.b16 %v1170
        %v1367 = vunpack.c.l.b16 %v1171
        %v1368 = vunpack.c.h.b16 %v1171
        %v1369 = vunpack.c.l.b16 %v1172
        %v1370 = vunpack.c.h.b16 %v1172
        %v1371 = vpack.c.b16 %v1245, %v1243
        %v1372 = vpack.c.b16 %v1246, %v1244
        %v1373 = vpack.c.b16 %v1249, %v1247
        %v1374 = vpack.c.b16 %v1250, %v1248
        %v1375 = vpack.c.b16 %v1253, %v1251
        %v1376 = vpack.c.b16 %v1254, %v1252
        %v1377 = vpack.c.b16 %v1257, %v1255
        %v1378 = vpack.c.b16 %v1258, %v1256
        %v1379 = vpack.c.b16 %v1261, %v1259
        %v1380 = vpack.c.b16 %v1262, %v1260
        %v1381 = vpack.c.b16 %v1265, %v1263
        %v1382 = vpack.c.b16 %v1266, %v1264
        %v1383 = vpack.c.b16 %v1269, %v1267
        %v1384 = vpack.c.b16 %v1270, %v1268
        %v1385 = vpack.c.b16 %v1273, %v1271
        %v1386 = vpack.c.b16 %v1274, %v1272
        %v1387 = vpack.c.b16 %v1277, %v1275
        %v1388 = vpack.c.b16 %v1278, %v1276
        %v1389 = vpack.c.b16 %v1281, %v1279
        %v1390 = vpack.c.b16 %v1282, %v1280
        %v1391 = vpack.c.b16 %v1285, %v1283
        %v1392 = vpack.c.b16 %v1286, %v1284
        %v1393 = vpack.c.b16 %v1289, %v1287
        %v1394 = vpack.c.b16 %v1290, %v1288
        %v1395 = vpack.c.b16 %v1293, %v1291
        %v1396 = vpack.c.b16 %v1294, %v1292
        %v1397 = vpack.c.b16 %v1297, %v1295
        %v1398 = vpack.c.b16 %v1298, %v1296
        %v1399 = vpack.c.b16 %v1301, %v1299
        %v1400 = vpack.c.b16 %v1302, %v1300
        %v1401 = vpack.c.b16 %v1305, %v1303
        %v1402 = vpack.c.b16 %v1306, %v1304
        %v1403 = vpack.c.b16 %v1309, %v1307
        %v1404 = vpack.c.b16 %v1310, %v1308
        %v1405 = vpack.c.b16 %v1313, %v1311
        %v1406 = vpack.c.b16 %v1314, %v1312
        %v1407 = vpack.c.b16 %v1317, %v1315
        %v1408 = vpack.c.b16 %v1318, %v1316
        %v1409 = vpack.c.b16 %v1321, %v1319
        %v1410 = vpack.c.b16 %v1322, %v1320
        %v1411 = vpack.c.b16 %v1325, %v1323
        %v1412 = vpack.c.b16 %v1326, %v1324
        %v1413 = vpack.c.b16 %v1329, %v1327
        %v1414 = vpack.c.b16 %v1330, %v1328
        %v1415 = vpack.c.b16 %v1333, %v1331
        %v1416 = vpack.c.b16 %v1334, %v1332
        %v1417 = vpack.c.b16 %v1337, %v1335
        %v1418 = vpack.c.b16 %v1338, %v1336
        %v1419 = vpack.c.b16 %v1341, %v1339
        %v1420 = vpack.c.b16 %v1342, %v1340
        %v1421 = vpack.c.b16 %v1345, %v1343
        %v1422 = vpack.c.b16 %v1346, %v1344
        %v1423 = vpack.c.b16 %v1349, %v1347
        %v1424 = vpack.c.b16 %v1350, %v1348
        %v1425 = vpack.c.b16 %v1353, %v1351
        %v1426 = vpack.c.b16 %v1354, %v1352
        %v1427 = vpack.c.b16 %v1357, %v1355
        %v1428 = vpack.c.b16 %v1358, %v1356
        %v1429 = vpack.c.b16 %v1361, %v1359
        %v1430 = vpack.c.b16 %v1362, %v1360
        %v1431 = vpack.c.b16 %v1365, %v1363
        %v1432 = vpack.c.b16 %v1366, %v1364
        %v1433 = vpack.c.b16 %v1369, %v1367
        %v1434 = vpack.c.b16 %v1370, %v1368
        %1499 = vmatpush.bf16.msra.mxu0 %v1385
        %1500 = vmatpush.bf16.msra.mxu0 %v1383
        %1501 = vmatpush.bf16.msra.mxu0 %v1381
        %1502 = vmatpush.bf16.msra.mxu0 %v1379
        %1503 = vmatpush.bf16.msra.mxu0 %v1377
        %1504 = vmatpush.bf16.msra.mxu0 %v1375
        %1505 = vmatpush.bf16.msra.mxu0 %v1373
        %1506 = vmatpush.bf16.msra.mxu0 %v1371
        %1507 = vmatmul.bf16.gmra.mxu0 %v1045
        %v1508 = vpop.f32.mrf.mxu0
        %v1509 = vadd.f32 %v1175, %v1508
        %v1510 = vpop.f32.mrf.mxu0
        %v1511 = vadd.f32 %v1175, %v1510
        %1512 = vmatmul.bf16.gmra.mxu0 %v1049
        %v1513 = vpop.f32.mrf.mxu0
        %v1514 = vadd.f32 %v1175, %v1513
        %v1515 = vpop.f32.mrf.mxu0
        %v1516 = vadd.f32 %v1175, %v1515
        %1517 = vmatmul.bf16.gmra.mxu0 %v1053
        %v1518 = vpop.f32.mrf.mxu0
        %v1519 = vadd.f32 %v1175, %v1518
        %v1520 = vpop.f32.mrf.mxu0
        %v1521 = vadd.f32 %v1175, %v1520
        %1522 = vmatmul.bf16.gmra.mxu0 %v1057
        %v1523 = vpop.f32.mrf.mxu0
        %v1524 = vadd.f32 %v1175, %v1523
        %v1525 = vpop.f32.mrf.mxu0
        %v1526 = vadd.f32 %v1175, %v1525
        %1527 = vmatmul.bf16.gmra.mxu0 %v1061
        %v1528 = vpop.f32.mrf.mxu0
        %v1529 = vadd.f32 %v1175, %v1528
        %v1530 = vpop.f32.mrf.mxu0
        %v1531 = vadd.f32 %v1175, %v1530
        %1532 = vmatmul.bf16.gmra.mxu0 %v1065
        %v1533 = vpop.f32.mrf.mxu0
        %v1534 = vadd.f32 %v1175, %v1533
        %v1535 = vpop.f32.mrf.mxu0
        %v1536 = vadd.f32 %v1175, %v1535
        %1537 = vmatmul.bf16.gmra.mxu0 %v1069
        %v1538 = vpop.f32.mrf.mxu0
        %v1539 = vadd.f32 %v1175, %v1538
        %v1540 = vpop.f32.mrf.mxu0
        %v1541 = vadd.f32 %v1175, %v1540
        %1542 = vmatmul.bf16.gmra.mxu0 %v1073
        %v1543 = vpop.f32.mrf.mxu0
        %v1544 = vadd.f32 %v1175, %v1543
        %v1545 = vpop.f32.mrf.mxu0
        %v1546 = vadd.f32 %v1175, %v1545
        %1547 = vmatmul.bf16.gmra.mxu0 %v1077
        %v1548 = vpop.f32.mrf.mxu0
        %v1549 = vadd.f32 %v1175, %v1548
        %v1550 = vpop.f32.mrf.mxu0
        %v1551 = vadd.f32 %v1175, %v1550
        %1552 = vmatmul.bf16.gmra.mxu0 %v1081
        %v1553 = vpop.f32.mrf.mxu0
        %v1554 = vadd.f32 %v1175, %v1553
        %v1555 = vpop.f32.mrf.mxu0
        %v1556 = vadd.f32 %v1175, %v1555
        %1557 = vmatmul.bf16.gmra.mxu0 %v1085
        %v1558 = vpop.f32.mrf.mxu0
        %v1559 = vadd.f32 %v1175, %v1558
        %v1560 = vpop.f32.mrf.mxu0
        %v1561 = vadd.f32 %v1175, %v1560
        %1562 = vmatmul.bf16.gmra.mxu0 %v1089
        %v1563 = vpop.f32.mrf.mxu0
        %v1564 = vadd.f32 %v1175, %v1563
        %v1565 = vpop.f32.mrf.mxu0
        %v1566 = vadd.f32 %v1175, %v1565
        %1567 = vmatmul.bf16.gmra.mxu0 %v1093
        %v1568 = vpop.f32.mrf.mxu0
        %v1569 = vadd.f32 %v1175, %v1568
        %v1570 = vpop.f32.mrf.mxu0
        %v1571 = vadd.f32 %v1175, %v1570
        %1572 = vmatmul.bf16.gmra.mxu0 %v1097
        %v1573 = vpop.f32.mrf.mxu0
        %v1574 = vadd.f32 %v1175, %v1573
        %v1575 = vpop.f32.mrf.mxu0
        %v1576 = vadd.f32 %v1175, %v1575
        %1577 = vmatmul.bf16.gmra.mxu0 %v1101
        %v1578 = vpop.f32.mrf.mxu0
        %v1579 = vadd.f32 %v1175, %v1578
        %v1580 = vpop.f32.mrf.mxu0
        %v1581 = vadd.f32 %v1175, %v1580
        %1582 = vmatmul.bf16.gmra.mxu0 %v1105
        %v1583 = vpop.f32.mrf.mxu0
        %v1584 = vadd.f32 %v1175, %v1583
        %v1585 = vpop.f32.mrf.mxu0
        %v1586 = vadd.f32 %v1175, %v1585
        %1587 = vdwg.mxu0
        %1588 = vmatpush.bf16.msra.mxu0 %v1401
        %1589 = vmatpush.bf16.msra.mxu0 %v1399
        %1590 = vmatpush.bf16.msra.mxu0 %v1397
        %1591 = vmatpush.bf16.msra.mxu0 %v1395
        %1592 = vmatpush.bf16.msra.mxu0 %v1393
        %1593 = vmatpush.bf16.msra.mxu0 %v1391
        %1594 = vmatpush.bf16.msra.mxu0 %v1389
        %1595 = vmatpush.bf16.msra.mxu0 %v1387
        %1596 = vmatmul.bf16.gmra.mxu0 %v1046
        %v1597 = vpop.f32.mrf.mxu0
        %v1598 = vadd.f32 %v1509, %v1597
        %v1599 = vpop.f32.mrf.mxu0
        %v1600 = vadd.f32 %v1511, %v1599
        %1601 = vmatmul.bf16.gmra.mxu0 %v1050
        %v1602 = vpop.f32.mrf.mxu0
        %v1603 = vadd.f32 %v1514, %v1602
        %v1604 = vpop.f32.mrf.mxu0
        %v1605 = vadd.f32 %v1516, %v1604
        %1606 = vmatmul.bf16.gmra.mxu0 %v1054
        %v1607 = vpop.f32.mrf.mxu0
        %v1608 = vadd.f32 %v1519, %v1607
        %v1609 = vpop.f32.mrf.mxu0
        %v1610 = vadd.f32 %v1521, %v1609
        %1611 = vmatmul.bf16.gmra.mxu0 %v1058
        %v1612 = vpop.f32.mrf.mxu0
        %v1613 = vadd.f32 %v1524, %v1612
        %v1614 = vpop.f32.mrf.mxu0
        %v1615 = vadd.f32 %v1526, %v1614
        %1616 = vmatmul.bf16.gmra.mxu0 %v1062
        %v1617 = vpop.f32.mrf.mxu0
        %v1618 = vadd.f32 %v1529, %v1617
        %v1619 = vpop.f32.mrf.mxu0
        %v1620 = vadd.f32 %v1531, %v1619
        %1621 = vmatmul.bf16.gmra.mxu0 %v1066
        %v1622 = vpop.f32.mrf.mxu0
        %v1623 = vadd.f32 %v1534, %v1622
        %v1624 = vpop.f32.mrf.mxu0
        %v1625 = vadd.f32 %v1536, %v1624
        %1626 = vmatmul.bf16.gmra.mxu0 %v1070
        %v1627 = vpop.f32.mrf.mxu0
        %v1628 = vadd.f32 %v1539, %v1627
        %v1629 = vpop.f32.mrf.mxu0
        %v1630 = vadd.f32 %v1541, %v1629
        %1631 = vmatmul.bf16.gmra.mxu0 %v1074
        %v1632 = vpop.f32.mrf.mxu0
        %v1633 = vadd.f32 %v1544, %v1632
        %v1634 = vpop.f32.mrf.mxu0
        %v1635 = vadd.f32 %v1546, %v1634
        %1636 = vmatmul.bf16.gmra.mxu0 %v1078
        %v1637 = vpop.f32.mrf.mxu0
        %v1638 = vadd.f32 %v1549, %v1637
        %v1639 = vpop.f32.mrf.mxu0
        %v1640 = vadd.f32 %v1551, %v1639
        %1641 = vmatmul.bf16.gmra.mxu0 %v1082
        %v1642 = vpop.f32.mrf.mxu0
        %v1643 = vadd.f32 %v1554, %v1642
        %v1644 = vpop.f32.mrf.mxu0
        %v1645 = vadd.f32 %v1556, %v1644
        %1646 = vmatmul.bf16.gmra.mxu0 %v1086
        %v1647 = vpop.f32.mrf.mxu0
        %v1648 = vadd.f32 %v1559, %v1647
        %v1649 = vpop.f32.mrf.mxu0
        %v1650 = vadd.f32 %v1561, %v1649
        %1651 = vmatmul.bf16.gmra.mxu0 %v1090
        %v1652 = vpop.f32.mrf.mxu0
        %v1653 = vadd.f32 %v1564, %v1652
        %v1654 = vpop.f32.mrf.mxu0
        %v1655 = vadd.f32 %v1566, %v1654
        %1656 = vmatmul.bf16.gmra.mxu0 %v1094
        %v1657 = vpop.f32.mrf.mxu0
        %v1658 = vadd.f32 %v1569, %v1657
        %v1659 = vpop.f32.mrf.mxu0
        %v1660 = vadd.f32 %v1571, %v1659
        %1661 = vmatmul.bf16.gmra.mxu0 %v1098
        %v1662 = vpop.f32.mrf.mxu0
        %v1663 = vadd.f32 %v1574, %v1662
        %v1664 = vpop.f32.mrf.mxu0
        %v1665 = vadd.f32 %v1576, %v1664
        %1666 = vmatmul.bf16.gmra.mxu0 %v1102
        %v1667 = vpop.f32.mrf.mxu0
        %v1668 = vadd.f32 %v1579, %v1667
        %v1669 = vpop.f32.mrf.mxu0
        %v1670 = vadd.f32 %v1581, %v1669
        %1671 = vmatmul.bf16.gmra.mxu0 %v1106
        %v1672 = vpop.f32.mrf.mxu0
        %v1673 = vadd.f32 %v1584, %v1672
        %v1674 = vpop.f32.mrf.mxu0
        %v1675 = vadd.f32 %v1586, %v1674
        %1676 = vdwg.mxu0
        %1677 = vmatpush.bf16.msra.mxu0 %v1417
        %1678 = vmatpush.bf16.msra.mxu0 %v1415
        %1679 = vmatpush.bf16.msra.mxu0 %v1413
        %1680 = vmatpush.bf16.msra.mxu0 %v1411
        %1681 = vmatpush.bf16.msra.mxu0 %v1409
        %1682 = vmatpush.bf16.msra.mxu0 %v1407
        %1683 = vmatpush.bf16.msra.mxu0 %v1405
        %1684 = vmatpush.bf16.msra.mxu0 %v1403
        %1685 = vmatmul.bf16.gmra.mxu0 %v1047
        %v1686 = vpop.f32.mrf.mxu0
        %v1687 = vadd.f32 %v1598, %v1686
        %v1688 = vpop.f32.mrf.mxu0
        %v1689 = vadd.f32 %v1600, %v1688
        %1690 = vmatmul.bf16.gmra.mxu0 %v1051
        %v1691 = vpop.f32.mrf.mxu0
        %v1692 = vadd.f32 %v1603, %v1691
        %v1693 = vpop.f32.mrf.mxu0
        %v1694 = vadd.f32 %v1605, %v1693
        %1695 = vmatmul.bf16.gmra.mxu0 %v1055
        %v1696 = vpop.f32.mrf.mxu0
        %v1697 = vadd.f32 %v1608, %v1696
        %v1698 = vpop.f32.mrf.mxu0
        %v1699 = vadd.f32 %v1610, %v1698
        %1700 = vmatmul.bf16.gmra.mxu0 %v1059
        %v1701 = vpop.f32.mrf.mxu0
        %v1702 = vadd.f32 %v1613, %v1701
        %v1703 = vpop.f32.mrf.mxu0
        %v1704 = vadd.f32 %v1615, %v1703
        %1705 = vmatmul.bf16.gmra.mxu0 %v1063
        %v1706 = vpop.f32.mrf.mxu0
        %v1707 = vadd.f32 %v1618, %v1706
        %v1708 = vpop.f32.mrf.mxu0
        %v1709 = vadd.f32 %v1620, %v1708
        %1710 = vmatmul.bf16.gmra.mxu0 %v1067
        %v1711 = vpop.f32.mrf.mxu0
        %v1712 = vadd.f32 %v1623, %v1711
        %v1713 = vpop.f32.mrf.mxu0
        %v1714 = vadd.f32 %v1625, %v1713
        %1715 = vmatmul.bf16.gmra.mxu0 %v1071
        %v1716 = vpop.f32.mrf.mxu0
        %v1717 = vadd.f32 %v1628, %v1716
        %v1718 = vpop.f32.mrf.mxu0
        %v1719 = vadd.f32 %v1630, %v1718
        %1720 = vmatmul.bf16.gmra.mxu0 %v1075
        %v1721 = vpop.f32.mrf.mxu0
        %v1722 = vadd.f32 %v1633, %v1721
        %v1723 = vpop.f32.mrf.mxu0
        %v1724 = vadd.f32 %v1635, %v1723
        %1725 = vmatmul.bf16.gmra.mxu0 %v1079
        %v1726 = vpop.f32.mrf.mxu0
        %v1727 = vadd.f32 %v1638, %v1726
        %v1728 = vpop.f32.mrf.mxu0
        %v1729 = vadd.f32 %v1640, %v1728
        %1730 = vmatmul.bf16.gmra.mxu0 %v1083
        %v1731 = vpop.f32.mrf.mxu0
        %v1732 = vadd.f32 %v1643, %v1731
        %v1733 = vpop.f32.mrf.mxu0
        %v1734 = vadd.f32 %v1645, %v1733
        %1735 = vmatmul.bf16.gmra.mxu0 %v1087
        %v1736 = vpop.f32.mrf.mxu0
        %v1737 = vadd.f32 %v1648, %v1736
        %v1738 = vpop.f32.mrf.mxu0
        %v1739 = vadd.f32 %v1650, %v1738
        %1740 = vmatmul.bf16.gmra.mxu0 %v1091
        %v1741 = vpop.f32.mrf.mxu0
        %v1742 = vadd.f32 %v1653, %v1741
        %v1743 = vpop.f32.mrf.mxu0
        %v1744 = vadd.f32 %v1655, %v1743
        %1745 = vmatmul.bf16.gmra.mxu0 %v1095
        %v1746 = vpop.f32.mrf.mxu0
        %v1747 = vadd.f32 %v1658, %v1746
        %v1748 = vpop.f32.mrf.mxu0
        %v1749 = vadd.f32 %v1660, %v1748
        %1750 = vmatmul.bf16.gmra.mxu0 %v1099
        %v1751 = vpop.f32.mrf.mxu0
        %v1752 = vadd.f32 %v1663, %v1751
        %v1753 = vpop.f32.mrf.mxu0
        %v1754 = vadd.f32 %v1665, %v1753
        %1755 = vmatmul.bf16.gmra.mxu0 %v1103
        %v1756 = vpop.f32.mrf.mxu0
        %v1757 = vadd.f32 %v1668, %v1756
        %v1758 = vpop.f32.mrf.mxu0
        %v1759 = vadd.f32 %v1670, %v1758
        %1760 = vmatmul.bf16.gmra.mxu0 %v1107
        %v1761 = vpop.f32.mrf.mxu0
        %v1762 = vadd.f32 %v1673, %v1761
        %v1763 = vpop.f32.mrf.mxu0
        %v1764 = vadd.f32 %v1675, %v1763
        %1765 = vdwg.mxu0
        %1766 = vmatpush.bf16.msra.mxu0 %v1433
        %1767 = vmatpush.bf16.msra.mxu0 %v1431
        %1768 = vmatpush.bf16.msra.mxu0 %v1429
        %1769 = vmatpush.bf16.msra.mxu0 %v1427
        %1770 = vmatpush.bf16.msra.mxu0 %v1425
        %1771 = vmatpush.bf16.msra.mxu0 %v1423
        %1772 = vmatpush.bf16.msra.mxu0 %v1421
        %1773 = vmatpush.bf16.msra.mxu0 %v1419
        %1774 = vmatmul.bf16.gmra.mxu0 %v1048
        %v1775 = vpop.f32.mrf.mxu0
        %v1776 = vadd.f32 %v1687, %v1775
        %v1777 = vpop.f32.mrf.mxu0
        %v1778 = vadd.f32 %v1689, %v1777
        %1779 = vmatmul.bf16.gmra.mxu0 %v1052
        %v1780 = vpop.f32.mrf.mxu0
        %v1781 = vadd.f32 %v1692, %v1780
        %v1782 = vpop.f32.mrf.mxu0
        %v1783 = vadd.f32 %v1694, %v1782
        %1784 = vmatmul.bf16.gmra.mxu0 %v1056
        %v1785 = vpop.f32.mrf.mxu0
        %v1786 = vadd.f32 %v1697, %v1785
        %v1787 = vpop.f32.mrf.mxu0
        %v1788 = vadd.f32 %v1699, %v1787
        %1789 = vmatmul.bf16.gmra.mxu0 %v1060
        %v1790 = vpop.f32.mrf.mxu0
        %v1791 = vadd.f32 %v1702, %v1790
        %v1792 = vpop.f32.mrf.mxu0
        %v1793 = vadd.f32 %v1704, %v1792
        %1794 = vmatmul.bf16.gmra.mxu0 %v1064
        %v1795 = vpop.f32.mrf.mxu0
        %v1796 = vadd.f32 %v1707, %v1795
        %v1797 = vpop.f32.mrf.mxu0
        %v1798 = vadd.f32 %v1709, %v1797
        %1799 = vmatmul.bf16.gmra.mxu0 %v1068
        %v1800 = vpop.f32.mrf.mxu0
        %v1801 = vadd.f32 %v1712, %v1800
        %v1802 = vpop.f32.mrf.mxu0
        %v1803 = vadd.f32 %v1714, %v1802
        %1804 = vmatmul.bf16.gmra.mxu0 %v1072
        %v1805 = vpop.f32.mrf.mxu0
        %v1806 = vadd.f32 %v1717, %v1805
        %v1807 = vpop.f32.mrf.mxu0
        %v1808 = vadd.f32 %v1719, %v1807
        %1809 = vmatmul.bf16.gmra.mxu0 %v1076
        %v1810 = vpop.f32.mrf.mxu0
        %v1811 = vadd.f32 %v1722, %v1810
        %v1812 = vpop.f32.mrf.mxu0
        %v1813 = vadd.f32 %v1724, %v1812
        %1814 = vmatmul.bf16.gmra.mxu0 %v1080
        %v1815 = vpop.f32.mrf.mxu0
        %v1816 = vadd.f32 %v1727, %v1815
        %v1817 = vpop.f32.mrf.mxu0
        %v1818 = vadd.f32 %v1729, %v1817
        %1819 = vmatmul.bf16.gmra.mxu0 %v1084
        %v1820 = vpop.f32.mrf.mxu0
        %v1821 = vadd.f32 %v1732, %v1820
        %v1822 = vpop.f32.mrf.mxu0
        %v1823 = vadd.f32 %v1734, %v1822
        %1824 = vmatmul.bf16.gmra.mxu0 %v1088
        %v1825 = vpop.f32.mrf.mxu0
        %v1826 = vadd.f32 %v1737, %v1825
        %v1827 = vpop.f32.mrf.mxu0
        %v1828 = vadd.f32 %v1739, %v1827
        %1829 = vmatmul.bf16.gmra.mxu0 %v1092
        %v1830 = vpop.f32.mrf.mxu0
        %v1831 = vadd.f32 %v1742, %v1830
        %v1832 = vpop.f32.mrf.mxu0
        %v1833 = vadd.f32 %v1744, %v1832
        %1834 = vmatmul.bf16.gmra.mxu0 %v1096
        %v1835 = vpop.f32.mrf.mxu0
        %v1836 = vadd.f32 %v1747, %v1835
        %v1837 = vpop.f32.mrf.mxu0
        %v1838 = vadd.f32 %v1749, %v1837
        %1839 = vmatmul.bf16.gmra.mxu0 %v1100
        %v1840 = vpop.f32.mrf.mxu0
        %v1841 = vadd.f32 %v1752, %v1840
        %v1842 = vpop.f32.mrf.mxu0
        %v1843 = vadd.f32 %v1754, %v1842
        %1844 = vmatmul.bf16.gmra.mxu0 %v1104
        %v1845 = vpop.f32.mrf.mxu0
        %v1846 = vadd.f32 %v1757, %v1845
        %v1847 = vpop.f32.mrf.mxu0
        %v1848 = vadd.f32 %v1759, %v1847
        %1849 = vmatmul.bf16.gmra.mxu0 %v1108
        %v1850 = vpop.f32.mrf.mxu0
        %v1851 = vadd.f32 %v1762, %v1850
        %v1852 = vpop.f32.mrf.mxu0
        %v1853 = vadd.f32 %v1764, %v1852
        %1854 = vdwg.mxu0
        %1855 = vmatpush.bf16.msra.mxu0 %v1386
        %1856 = vmatpush.bf16.msra.mxu0 %v1384
        %1857 = vmatpush.bf16.msra.mxu0 %v1382
        %1858 = vmatpush.bf16.msra.mxu0 %v1380
        %1859 = vmatpush.bf16.msra.mxu0 %v1378
        %1860 = vmatpush.bf16.msra.mxu0 %v1376
        %1861 = vmatpush.bf16.msra.mxu0 %v1374
        %1862 = vmatpush.bf16.msra.mxu0 %v1372
        %1863 = vmatmul.bf16.gmra.mxu0 %v1045
        %v1864 = vpop.f32.mrf.mxu0
        %v1865 = vadd.f32 %v1176, %v1864
        %v1866 = vpop.f32.mrf.mxu0
        %v1867 = vadd.f32 %v1176, %v1866
        %1868 = vmatmul.bf16.gmra.mxu0 %v1049
        %v1869 = vpop.f32.mrf.mxu0
        %v1870 = vadd.f32 %v1176, %v1869
        %v1871 = vpop.f32.mrf.mxu0
        %v1872 = vadd.f32 %v1176, %v1871
        %1873 = vmatmul.bf16.gmra.mxu0 %v1053
        %v1874 = vpop.f32.mrf.mxu0
        %v1875 = vadd.f32 %v1176, %v1874
        %v1876 = vpop.f32.mrf.mxu0
        %v1877 = vadd.f32 %v1176, %v1876
        %1878 = vmatmul.bf16.gmra.mxu0 %v1057
        %v1879 = vpop.f32.mrf.mxu0
        %v1880 = vadd.f32 %v1176, %v1879
        %v1881 = vpop.f32.mrf.mxu0
        %v1882 = vadd.f32 %v1176, %v1881
        %1883 = vmatmul.bf16.gmra.mxu0 %v1061
        %v1884 = vpop.f32.mrf.mxu0
        %v1885 = vadd.f32 %v1176, %v1884
        %v1886 = vpop.f32.mrf.mxu0
        %v1887 = vadd.f32 %v1176, %v1886
        %1888 = vmatmul.bf16.gmra.mxu0 %v1065
        %v1889 = vpop.f32.mrf.mxu0
        %v1890 = vadd.f32 %v1176, %v1889
        %v1891 = vpop.f32.mrf.mxu0
        %v1892 = vadd.f32 %v1176, %v1891
        %1893 = vmatmul.bf16.gmra.mxu0 %v1069
        %v1894 = vpop.f32.mrf.mxu0
        %v1895 = vadd.f32 %v1176, %v1894
        %v1896 = vpop.f32.mrf.mxu0
        %v1897 = vadd.f32 %v1176, %v1896
        %1898 = vmatmul.bf16.gmra.mxu0 %v1073
        %v1899 = vpop.f32.mrf.mxu0
        %v1900 = vadd.f32 %v1176, %v1899
        %v1901 = vpop.f32.mrf.mxu0
        %v1902 = vadd.f32 %v1176, %v1901
        %1903 = vmatmul.bf16.gmra.mxu0 %v1077
        %v1904 = vpop.f32.mrf.mxu0
        %v1905 = vadd.f32 %v1176, %v1904
        %v1906 = vpop.f32.mrf.mxu0
        %v1907 = vadd.f32 %v1176, %v1906
        %1908 = vmatmul.bf16.gmra.mxu0 %v1081
        %v1909 = vpop.f32.mrf.mxu0
        %v1910 = vadd.f32 %v1176, %v1909
        %v1911 = vpop.f32.mrf.mxu0
        %v1912 = vadd.f32 %v1176, %v1911
        %1913 = vmatmul.bf16.gmra.mxu0 %v1085
        %v1914 = vpop.f32.mrf.mxu0
        %v1915 = vadd.f32 %v1176, %v1914
        %v1916 = vpop.f32.mrf.mxu0
        %v1917 = vadd.f32 %v1176, %v1916
        %1918 = vmatmul.bf16.gmra.mxu0 %v1089
        %v1919 = vpop.f32.mrf.mxu0
        %v1920 = vadd.f32 %v1176, %v1919
        %v1921 = vpop.f32.mrf.mxu0
        %v1922 = vadd.f32 %v1176, %v1921
        %1923 = vmatmul.bf16.gmra.mxu0 %v1093
        %v1924 = vpop.f32.mrf.mxu0
        %v1925 = vadd.f32 %v1176, %v1924
        %v1926 = vpop.f32.mrf.mxu0
        %v1927 = vadd.f32 %v1176, %v1926
        %1928 = vmatmul.bf16.gmra.mxu0 %v1097
        %v1929 = vpop.f32.mrf.mxu0
        %v1930 = vadd.f32 %v1176, %v1929
        %v1931 = vpop.f32.mrf.mxu0
        %v1932 = vadd.f32 %v1176, %v1931
        %1933 = vmatmul.bf16.gmra.mxu0 %v1101
        %v1934 = vpop.f32.mrf.mxu0
        %v1935 = vadd.f32 %v1176, %v1934
        %v1936 = vpop.f32.mrf.mxu0
        %v1937 = vadd.f32 %v1176, %v1936
        %1938 = vmatmul.bf16.gmra.mxu0 %v1105
        %v1939 = vpop.f32.mrf.mxu0
        %v1940 = vadd.f32 %v1176, %v1939
        %v1941 = vpop.f32.mrf.mxu0
        %v1942 = vadd.f32 %v1176, %v1941
        %1943 = vdwg.mxu0
        %1944 = vmatpush.bf16.msra.mxu0 %v1402
        %1945 = vmatpush.bf16.msra.mxu0 %v1400
        %1946 = vmatpush.bf16.msra.mxu0 %v1398
        %1947 = vmatpush.bf16.msra.mxu0 %v1396
        %1948 = vmatpush.bf16.msra.mxu0 %v1394
        %1949 = vmatpush.bf16.msra.mxu0 %v1392
        %1950 = vmatpush.bf16.msra.mxu0 %v1390
        %1951 = vmatpush.bf16.msra.mxu0 %v1388
        %1952 = vmatmul.bf16.gmra.mxu0 %v1046
        %v1953 = vpop.f32.mrf.mxu0
        %v1954 = vadd.f32 %v1865, %v1953
        %v1955 = vpop.f32.mrf.mxu0
        %v1956 = vadd.f32 %v1867, %v1955
        %1957 = vmatmul.bf16.gmra.mxu0 %v1050
        %v1958 = vpop.f32.mrf.mxu0
        %v1959 = vadd.f32 %v1870, %v1958
        %v1960 = vpop.f32.mrf.mxu0
        %v1961 = vadd.f32 %v1872, %v1960
        %1962 = vmatmul.bf16.gmra.mxu0 %v1054
        %v1963 = vpop.f32.mrf.mxu0
        %v1964 = vadd.f32 %v1875, %v1963
        %v1965 = vpop.f32.mrf.mxu0
        %v1966 = vadd.f32 %v1877, %v1965
        %1967 = vmatmul.bf16.gmra.mxu0 %v1058
        %v1968 = vpop.f32.mrf.mxu0
        %v1969 = vadd.f32 %v1880, %v1968
        %v1970 = vpop.f32.mrf.mxu0
        %v1971 = vadd.f32 %v1882, %v1970
        %1972 = vmatmul.bf16.gmra.mxu0 %v1062
        %v1973 = vpop.f32.mrf.mxu0
        %v1974 = vadd.f32 %v1885, %v1973
        %v1975 = vpop.f32.mrf.mxu0
        %v1976 = vadd.f32 %v1887, %v1975
        %1977 = vmatmul.bf16.gmra.mxu0 %v1066
        %v1978 = vpop.f32.mrf.mxu0
        %v1979 = vadd.f32 %v1890, %v1978
        %v1980 = vpop.f32.mrf.mxu0
        %v1981 = vadd.f32 %v1892, %v1980
        %1982 = vmatmul.bf16.gmra.mxu0 %v1070
        %v1983 = vpop.f32.mrf.mxu0
        %v1984 = vadd.f32 %v1895, %v1983
        %v1985 = vpop.f32.mrf.mxu0
        %v1986 = vadd.f32 %v1897, %v1985
        %1987 = vmatmul.bf16.gmra.mxu0 %v1074
        %v1988 = vpop.f32.mrf.mxu0
        %v1989 = vadd.f32 %v1900, %v1988
        %v1990 = vpop.f32.mrf.mxu0
        %v1991 = vadd.f32 %v1902, %v1990
        %1992 = vmatmul.bf16.gmra.mxu0 %v1078
        %v1993 = vpop.f32.mrf.mxu0
        %v1994 = vadd.f32 %v1905, %v1993
        %v1995 = vpop.f32.mrf.mxu0
        %v1996 = vadd.f32 %v1907, %v1995
        %1997 = vmatmul.bf16.gmra.mxu0 %v1082
        %v1998 = vpop.f32.mrf.mxu0
        %v1999 = vadd.f32 %v1910, %v1998
        %v2000 = vpop.f32.mrf.mxu0
        %v2001 = vadd.f32 %v1912, %v2000
        %2002 = vmatmul.bf16.gmra.mxu0 %v1086
        %v2003 = vpop.f32.mrf.mxu0
        %v2004 = vadd.f32 %v1915, %v2003
        %v2005 = vpop.f32.mrf.mxu0
        %v2006 = vadd.f32 %v1917, %v2005
        %2007 = vmatmul.bf16.gmra.mxu0 %v1090
        %v2008 = vpop.f32.mrf.mxu0
        %v2009 = vadd.f32 %v1920, %v2008
        %v2010 = vpop.f32.mrf.mxu0
        %v2011 = vadd.f32 %v1922, %v2010
        %2012 = vmatmul.bf16.gmra.mxu0 %v1094
        %v2013 = vpop.f32.mrf.mxu0
        %v2014 = vadd.f32 %v1925, %v2013
        %v2015 = vpop.f32.mrf.mxu0
        %v2016 = vadd.f32 %v1927, %v2015
        %2017 = vmatmul.bf16.gmra.mxu0 %v1098
        %v2018 = vpop.f32.mrf.mxu0
        %v2019 = vadd.f32 %v1930, %v2018
        %v2020 = vpop.f32.mrf.mxu0
        %v2021 = vadd.f32 %v1932, %v2020
        %2022 = vmatmul.bf16.gmra.mxu0 %v1102
        %v2023 = vpop.f32.mrf.mxu0
        %v2024 = vadd.f32 %v1935, %v2023
        %v2025 = vpop.f32.mrf.mxu0
        %v2026 = vadd.f32 %v1937, %v2025
        %2027 = vmatmul.bf16.gmra.mxu0 %v1106
        %v2028 = vpop.f32.mrf.mxu0
        %v2029 = vadd.f32 %v1940, %v2028
        %v2030 = vpop.f32.mrf.mxu0
        %v2031 = vadd.f32 %v1942, %v2030
        %2032 = vdwg.mxu0
        %2033 = vmatpush.bf16.msra.mxu0 %v1418
        %2034 = vmatpush.bf16.msra.mxu0 %v1416
        %2035 = vmatpush.bf16.msra.mxu0 %v1414
        %2036 = vmatpush.bf16.msra.mxu0 %v1412
        %2037 = vmatpush.bf16.msra.mxu0 %v1410
        %2038 = vmatpush.bf16.msra.mxu0 %v1408
        %2039 = vmatpush.bf16.msra.mxu0 %v1406
        %2040 = vmatpush.bf16.msra.mxu0 %v1404
        %2041 = vmatmul.bf16.gmra.mxu0 %v1047
        %v2042 = vpop.f32.mrf.mxu0
        %v2043 = vadd.f32 %v1954, %v2042
        %v2044 = vpop.f32.mrf.mxu0
        %v2045 = vadd.f32 %v1956, %v2044
        %2046 = vmatmul.bf16.gmra.mxu0 %v1051
        %v2047 = vpop.f32.mrf.mxu0
        %v2048 = vadd.f32 %v1959, %v2047
        %v2049 = vpop.f32.mrf.mxu0
        %v2050 = vadd.f32 %v1961, %v2049
        %2051 = vmatmul.bf16.gmra.mxu0 %v1055
        %v2052 = vpop.f32.mrf.mxu0
        %v2053 = vadd.f32 %v1964, %v2052
        %v2054 = vpop.f32.mrf.mxu0
        %v2055 = vadd.f32 %v1966, %v2054
        %2056 = vmatmul.bf16.gmra.mxu0 %v1059
        %v2057 = vpop.f32.mrf.mxu0
        %v2058 = vadd.f32 %v1969, %v2057
        %v2059 = vpop.f32.mrf.mxu0
        %v2060 = vadd.f32 %v1971, %v2059
        %2061 = vmatmul.bf16.gmra.mxu0 %v1063
        %v2062 = vpop.f32.mrf.mxu0
        %v2063 = vadd.f32 %v1974, %v2062
        %v2064 = vpop.f32.mrf.mxu0
        %v2065 = vadd.f32 %v1976, %v2064
        %2066 = vmatmul.bf16.gmra.mxu0 %v1067
        %v2067 = vpop.f32.mrf.mxu0
        %v2068 = vadd.f32 %v1979, %v2067
        %v2069 = vpop.f32.mrf.mxu0
        %v2070 = vadd.f32 %v1981, %v2069
        %2071 = vmatmul.bf16.gmra.mxu0 %v1071
        %v2072 = vpop.f32.mrf.mxu0
        %v2073 = vadd.f32 %v1984, %v2072
        %v2074 = vpop.f32.mrf.mxu0
        %v2075 = vadd.f32 %v1986, %v2074
        %2076 = vmatmul.bf16.gmra.mxu0 %v1075
        %v2077 = vpop.f32.mrf.mxu0
        %v2078 = vadd.f32 %v1989, %v2077
        %v2079 = vpop.f32.mrf.mxu0
        %v2080 = vadd.f32 %v1991, %v2079
        %2081 = vmatmul.bf16.gmra.mxu0 %v1079
        %v2082 = vpop.f32.mrf.mxu0
        %v2083 = vadd.f32 %v1994, %v2082
        %v2084 = vpop.f32.mrf.mxu0
        %v2085 = vadd.f32 %v1996, %v2084
        %2086 = vmatmul.bf16.gmra.mxu0 %v1083
        %v2087 = vpop.f32.mrf.mxu0
        %v2088 = vadd.f32 %v1999, %v2087
        %v2089 = vpop.f32.mrf.mxu0
        %v2090 = vadd.f32 %v2001, %v2089
        %2091 = vmatmul.bf16.gmra.mxu0 %v1087
        %v2092 = vpop.f32.mrf.mxu0
        %v2093 = vadd.f32 %v2004, %v2092
        %v2094 = vpop.f32.mrf.mxu0
        %v2095 = vadd.f32 %v2006, %v2094
        %2096 = vmatmul.bf16.gmra.mxu0 %v1091
        %v2097 = vpop.f32.mrf.mxu0
        %v2098 = vadd.f32 %v2009, %v2097
        %v2099 = vpop.f32.mrf.mxu0
        %v2100 = vadd.f32 %v2011, %v2099
        %2101 = vmatmul.bf16.gmra.mxu0 %v1095
        %v2102 = vpop.f32.mrf.mxu0
        %v2103 = vadd.f32 %v2014, %v2102
        %v2104 = vpop.f32.mrf.mxu0
        %v2105 = vadd.f32 %v2016, %v2104
        %2106 = vmatmul.bf16.gmra.mxu0 %v1099
        %v2107 = vpop.f32.mrf.mxu0
        %v2108 = vadd.f32 %v2019, %v2107
        %v2109 = vpop.f32.mrf.mxu0
        %v2110 = vadd.f32 %v2021, %v2109
        %2111 = vmatmul.bf16.gmra.mxu0 %v1103
        %v2112 = vpop.f32.mrf.mxu0
        %v2113 = vadd.f32 %v2024, %v2112
        %v2114 = vpop.f32.mrf.mxu0
        %v2115 = vadd.f32 %v2026, %v2114
        %2116 = vmatmul.bf16.gmra.mxu0 %v1107
        %v2117 = vpop.f32.mrf.mxu0
        %v2118 = vadd.f32 %v2029, %v2117
        %v2119 = vpop.f32.mrf.mxu0
        %v2120 = vadd.f32 %v2031, %v2119
        %2121 = vdwg.mxu0
        %2122 = vmatpush.bf16.msra.mxu0 %v1434
        %2123 = vmatpush.bf16.msra.mxu0 %v1432
        %2124 = vmatpush.bf16.msra.mxu0 %v1430
        %2125 = vmatpush.bf16.msra.mxu0 %v1428
        %2126 = vmatpush.bf16.msra.mxu0 %v1426
        %2127 = vmatpush.bf16.msra.mxu0 %v1424
        %2128 = vmatpush.bf16.msra.mxu0 %v1422
        %2129 = vmatpush.bf16.msra.mxu0 %v1420
        %2130 = vmatmul.bf16.gmra.mxu0 %v1048
        %v2131 = vpop.f32.mrf.mxu0
        %v2132 = vadd.f32 %v2043, %v2131
        %v2133 = vpop.f32.mrf.mxu0
        %v2134 = vadd.f32 %v2045, %v2133
        %2135 = vmatmul.bf16.gmra.mxu0 %v1052
        %v2136 = vpop.f32.mrf.mxu0
        %v2137 = vadd.f32 %v2048, %v2136
        %v2138 = vpop.f32.mrf.mxu0
        %v2139 = vadd.f32 %v2050, %v2138
        %2140 = vmatmul.bf16.gmra.mxu0 %v1056
        %v2141 = vpop.f32.mrf.mxu0
        %v2142 = vadd.f32 %v2053, %v2141
        %v2143 = vpop.f32.mrf.mxu0
        %v2144 = vadd.f32 %v2055, %v2143
        %2145 = vmatmul.bf16.gmra.mxu0 %v1060
        %v2146 = vpop.f32.mrf.mxu0
        %v2147 = vadd.f32 %v2058, %v2146
        %v2148 = vpop.f32.mrf.mxu0
        %v2149 = vadd.f32 %v2060, %v2148
        %2150 = vmatmul.bf16.gmra.mxu0 %v1064
        %v2151 = vpop.f32.mrf.mxu0
        %v2152 = vadd.f32 %v2063, %v2151
        %v2153 = vpop.f32.mrf.mxu0
        %v2154 = vadd.f32 %v2065, %v2153
        %2155 = vmatmul.bf16.gmra.mxu0 %v1068
        %v2156 = vpop.f32.mrf.mxu0
        %v2157 = vadd.f32 %v2068, %v2156
        %v2158 = vpop.f32.mrf.mxu0
        %v2159 = vadd.f32 %v2070, %v2158
        %2160 = vmatmul.bf16.gmra.mxu0 %v1072
        %v2161 = vpop.f32.mrf.mxu0
        %v2162 = vadd.f32 %v2073, %v2161
        %v2163 = vpop.f32.mrf.mxu0
        %v2164 = vadd.f32 %v2075, %v2163
        %2165 = vmatmul.bf16.gmra.mxu0 %v1076
        %v2166 = vpop.f32.mrf.mxu0
        %v2167 = vadd.f32 %v2078, %v2166
        %v2168 = vpop.f32.mrf.mxu0
        %v2169 = vadd.f32 %v2080, %v2168
        %2170 = vmatmul.bf16.gmra.mxu0 %v1080
        %v2171 = vpop.f32.mrf.mxu0
        %v2172 = vadd.f32 %v2083, %v2171
        %v2173 = vpop.f32.mrf.mxu0
        %v2174 = vadd.f32 %v2085, %v2173
        %2175 = vmatmul.bf16.gmra.mxu0 %v1084
        %v2176 = vpop.f32.mrf.mxu0
        %v2177 = vadd.f32 %v2088, %v2176
        %v2178 = vpop.f32.mrf.mxu0
        %v2179 = vadd.f32 %v2090, %v2178
        %2180 = vmatmul.bf16.gmra.mxu0 %v1088
        %v2181 = vpop.f32.mrf.mxu0
        %v2182 = vadd.f32 %v2093, %v2181
        %v2183 = vpop.f32.mrf.mxu0
        %v2184 = vadd.f32 %v2095, %v2183
        %2185 = vmatmul.bf16.gmra.mxu0 %v1092
        %v2186 = vpop.f32.mrf.mxu0
        %v2187 = vadd.f32 %v2098, %v2186
        %v2188 = vpop.f32.mrf.mxu0
        %v2189 = vadd.f32 %v2100, %v2188
        %2190 = vmatmul.bf16.gmra.mxu0 %v1096
        %v2191 = vpop.f32.mrf.mxu0
        %v2192 = vadd.f32 %v2103, %v2191
        %v2193 = vpop.f32.mrf.mxu0
        %v2194 = vadd.f32 %v2105, %v2193
        %2195 = vmatmul.bf16.gmra.mxu0 %v1100
        %v2196 = vpop.f32.mrf.mxu0
        %v2197 = vadd.f32 %v2108, %v2196
        %v2198 = vpop.f32.mrf.mxu0
        %v2199 = vadd.f32 %v2110, %v2198
        %2200 = vmatmul.bf16.gmra.mxu0 %v1104
        %v2201 = vpop.f32.mrf.mxu0
        %v2202 = vadd.f32 %v2113, %v2201
        %v2203 = vpop.f32.mrf.mxu0
        %v2204 = vadd.f32 %v2115, %v2203
        %2205 = vmatmul.bf16.gmra.mxu0 %v1108
        %v2206 = vpop.f32.mrf.mxu0
        %v2207 = vadd.f32 %v2118, %v2206
        %v2208 = vpop.f32.mrf.mxu0
        %v2209 = vadd.f32 %v2120, %v2208
        %2210 = vdwg.mxu0
        %2211 = vst [vmem:[%s299] sm:$0xff] %v1776
        %2212 = vst [vmem:[%s299 + $0x8] sm:$0xff] %v2132
        %2213 = vst [vmem:[%s299 + $0x10] sm:$0xff] %v1778
        %2214 = vst [vmem:[%s299 + $0x18] sm:$0xff] %v2134
        %2215 = vst [vmem:[%s299 + $0x20] sm:$0xff] %v1781
        %2216 = vst [vmem:[%s299 + $0x28] sm:$0xff] %v2137
        %2217 = vst [vmem:[%s299 + $0x30] sm:$0xff] %v1783
        %2218 = vst [vmem:[%s299 + $0x38] sm:$0xff] %v2139
        %2219 = vst [vmem:[%s299 + $0x40] sm:$0xff] %v1786
        %2220 = vst [vmem:[%s299 + $0x48] sm:$0xff] %v2142
        %2221 = vst [vmem:[%s299 + $0x50] sm:$0xff] %v1788
        %2222 = vst [vmem:[%s299 + $0x58] sm:$0xff] %v2144
        %2223 = vst [vmem:[%s299 + $0x60] sm:$0xff] %v1791
        %2224 = vst [vmem:[%s299 + $0x68] sm:$0xff] %v2147
        %2225 = vst [vmem:[%s299 + $0x70] sm:$0xff] %v1793
        %2226 = vst [vmem:[%s299 + $0x78] sm:$0xff] %v2149
        %2227 = vst [vmem:[%s299 + $0x80] sm:$0xff] %v1796
        %2228 = vst [vmem:[%s299 + $0x88] sm:$0xff] %v2152
        %2229 = vst [vmem:[%s299 + $0x90] sm:$0xff] %v1798
        %2230 = vst [vmem:[%s299 + $0x98] sm:$0xff] %v2154
        %2231 = vst [vmem:[%s299 + $0xa0] sm:$0xff] %v1801
        %2232 = vst [vmem:[%s299 + $0xa8] sm:$0xff] %v2157
        %2233 = vst [vmem:[%s299 + $0xb0] sm:$0xff] %v1803
        %2234 = vst [vmem:[%s299 + $0xb8] sm:$0xff] %v2159
        %2235 = vst [vmem:[%s299 + $0xc0] sm:$0xff] %v1806
        %2236 = vst [vmem:[%s299 + $0xc8] sm:$0xff] %v2162
        %2237 = vst [vmem:[%s299 + $0xd0] sm:$0xff] %v1808
        %2238 = vst [vmem:[%s299 + $0xd8] sm:$0xff] %v2164
        %2239 = vst [vmem:[%s299 + $0xe0] sm:$0xff] %v1811
        %2240 = vst [vmem:[%s299 + $0xe8] sm:$0xff] %v2167
        %2241 = vst [vmem:[%s299 + $0xf0] sm:$0xff] %v1813
        %2242 = vst [vmem:[%s299 + $0xf8] sm:$0xff] %v2169
        %2243 = vst [vmem:[%s299 + $0x100] sm:$0xff] %v1816
        %2244 = vst [vmem:[%s299 + $0x108] sm:$0xff] %v2172
        %2245 = vst [vmem:[%s299 + $0x110] sm:$0xff] %v1818
        %2246 = vst [vmem:[%s299 + $0x118] sm:$0xff] %v2174
        %2247 = vst [vmem:[%s299 + $0x120] sm:$0xff] %v1821
        %2248 = vst [vmem:[%s299 + $0x128] sm:$0xff] %v2177
        %2249 = vst [vmem:[%s299 + $0x130] sm:$0xff] %v1823
        %2250 = vst [vmem:[%s299 + $0x138] sm:$0xff] %v2179
        %2251 = vst [vmem:[%s299 + $0x140] sm:$0xff] %v1826
        %2252 = vst [vmem:[%s299 + $0x148] sm:$0xff] %v2182
        %2253 = vst [vmem:[%s299 + $0x150] sm:$0xff] %v1828
        %2254 = vst [vmem:[%s299 + $0x158] sm:$0xff] %v2184
        %2255 = vst [vmem:[%s299 + $0x160] sm:$0xff] %v1831
        %2256 = vst [vmem:[%s299 + $0x168] sm:$0xff] %v2187
        %2257 = vst [vmem:[%s299 + $0x170] sm:$0xff] %v1833
        %2258 = vst [vmem:[%s299 + $0x178] sm:$0xff] %v2189
        %2259 = vst [vmem:[%s299 + $0x180] sm:$0xff] %v1836
        %2260 = vst [vmem:[%s299 + $0x188] sm:$0xff] %v2192
        %2261 = vst [vmem:[%s299 + $0x190] sm:$0xff] %v1838
        %2262 = vst [vmem:[%s299 + $0x198] sm:$0xff] %v2194
        %2263 = vst [vmem:[%s299 + $0x1a0] sm:$0xff] %v1841
        %2264 = vst [vmem:[%s299 + $0x1a8] sm:$0xff] %v2197
        %2265 = vst [vmem:[%s299 + $0x1b0] sm:$0xff] %v1843
        %2266 = vst [vmem:[%s299 + $0x1b8] sm:$0xff] %v2199
        %2267 = vst [vmem:[%s299 + $0x1c0] sm:$0xff] %v1846
        %2268 = vst [vmem:[%s299 + $0x1c8] sm:$0xff] %v2202
        %2269 = vst [vmem:[%s299 + $0x1d0] sm:$0xff] %v1848
        %2270 = vst [vmem:[%s299 + $0x1d8] sm:$0xff] %v2204
        %2271 = vst [vmem:[%s299 + $0x1e0] sm:$0xff] %v1851
        %2272 = vst [vmem:[%s299 + $0x1e8] sm:$0xff] %v2207
        %2273 = vst [vmem:[%s299 + $0x1f0] sm:$0xff] %v1853
        %2274 = vst [vmem:[%s299 + $0x1f8] sm:$0xff] %v2209
        %s2275 = sand.u32 %s142, 1
        %s2276 = scalar_lea.sflag [#allocation4], %s2275
        %s2277 = sand.u32 %s142, 1
        %s2278 = smul.addr %s2277, 512
        %s2279 = scalar_lea.vmem [#allocation10], %s2278
        // Predicated region
        $region57: #{tpu_custom_call.1} parent=39 // pred_check
          %p2280 = pneg %p152
        $region58: #{tpu_custom_call.1} parent=39 // pred_check_branch
          %2282 = sbr.rel (%p2280) target = $region60
        $region59: #{tpu_custom_call.1} parent=39 // pred_region
          %s2283 = smul.u32 32, %s24
          %s2284 = ssub.s32 38, %s2283
          %p2285 = scmp.lt.s32.totalorder %s2284, 32
          %s2286 = scalar_select %p2285, %s2284, 32
          %s2287 = smul.u32 8, %s2286
          %s2288 = smul.u32 %s2287, 2
          %s2289 = ssub.s32 512, %s2288
          %s2290 = sshll.u32 %s2289, 4
          %2291 = vsyncadd %s2276, %s2290
          %p2292 = scmp.ne.s32.totalorder 0, %s2288
          %s2293 = smul.addr %s2283, 2
          %s2294 = smul.addr %s2293, 8
          %s2295 = scalar_lea.hbm %s5, %s2294
          %s2296 = smul.u32 16, %s2286
          %s2297 = sshll.u32 %s2279, 4
          %s2298 = int_to_ptr.vmem [resolvable:$true] %s2297
          %s2299 = sshll.u32 %s2295, 4
          %s2300 = int_to_ptr.hbm [resolvable:$true] %s2299
          %s2301 = sshll.u32 %s2296, 4
          %2305 = dma.vmem_to_hbm [thread:$0]  (%p2292), %s2298, %s2301, %s2300, %s2276, 256, 256, 16
        $region60: #{tpu_custom_call.1} parent=39 // pred_fallthru
          _
      $region40: #{tpu_custom_call.1} parent=5 // pred_fallthru
        _
      %p2306 = scmp.le.s32.totalorder 2, %s19
      // Predicated region
      $region61: #{tpu_custom_call.1} parent=5 // pred_check
        %p2307 = pneg %p2306
      $region62: #{tpu_custom_call.1} parent=5 // pred_check_branch
        %2309 = sbr.rel (%p2307) target = $region64
      $region63: #{tpu_custom_call.1} parent=5 // pred_region
        %s2310 = ssub.s32 %s19, 2
        // Predicated region
        $region65: #{tpu_custom_call.1} parent=63 // pred_check
          %p2311 = pneg %p158
        $region66: #{tpu_custom_call.1} parent=63 // pred_check_branch
          %2313 = sbr.rel (%p2311) target = $region68
        $region67: #{tpu_custom_call.1} parent=63 // pred_region
          %s2314 = sand.u32 %s143, 1
          %s2315 = scalar_lea.sflag [#allocation4], %s2314
          %s2316 = sand.u32 %s143, 1
          %s2317 = smul.addr %s2316, 512
          %s2318 = scalar_lea.vmem [#allocation10], %s2317
          %2320 = dma.done %s2315, 8192
        $region68: #{tpu_custom_call.1} parent=63 // pred_fallthru
          _
      $region64: #{tpu_custom_call.1} parent=5 // pred_fallthru
        _
    $region6: #{tpu_custom_call.1} parent=1 // loop_footer
      %s23 = sadd.s32 1, %s19
    $region7: #{tpu_custom_call.1} parent=1 // loop_footer_branch
      %18 = sbr.rel target = $region3
    $region8: #{tpu_custom_call.1} parent=1 // loop_exit
      _
    %2321 = vsyncpa [#allocation3], 1
    %s2322 = scalar_lea.sflag [#allocation3], 1
    %2323 = vsyncpa %s2322, 1
    %2324 = vsyncpa [#allocation6], 1
    %2325 = vsyncpa [#allocation9], 1
    %2326 = vsyncpa [#allocation4], 1
    %s2327 = scalar_lea.sflag [#allocation4], 1
    %2328 = vsyncpa %s2327, 1

</llo_original>
